<compile_context>
chip_gen: v6e
topology: v6e:2x2x1
jax: 0.10.0
libtpu: 0.0.40
codegen_flags: <defaults>
</compile_context>

<pallas_src>
import jax
import jax.numpy as jnp
import numpy as np
from jax import lax
from jax.experimental import pallas as pl
from jax.experimental.pallas import tpu as pltpu

_LANE = 128


def _round_up(x, m):
    return (x + m - 1) // m * m


def _pick_row_tile(out_h, out_w, target_m=1024):
    """Largest divisor of out_h whose matmul M-extent (TH*out_w) stays <= target."""
    best = 1
    for t in range(1, out_h + 1):
        if out_h % t == 0 and t * out_w <= max(target_m, out_w):
            best = t
    return best


def _pick_row_chunk(th, wq, cp_in, budget_bytes=96 * 1024):
    """Largest divisor of TH whose f32 accumulator (chunk*wq*cp_in*4B) fits in vregs."""
    per_row = wq * cp_in * 4
    best = 1
    for c in range(1, th + 1):
        if th % c == 0 and c * per_row <= max(budget_bytes, per_row):
            best = c
    return best


# ----------------------------- Pallas kernel ------------------------------ #
def _make_kernel(s, th, ch, out_w, use_relu6, cp_in, cp_out):
    n_chunks = th // ch

    def kernel(x_ref, dw_w_ref, b1_ref, pw_w_ref, b2_ref, o_ref, h_ref):
        # x_ref   : (s*s, Hq, Wq, cp_in)   phase-decomposed padded input (1 batch)
        # dw_w_ref: (3, 3, cp_in)          depthwise weights, BN1 scale folded in
        # b1_ref  : (1, cp_in)             folded BN1 bias (incl. conv bias)
        # pw_w_ref: (cp_in, cp_out)        pointwise weights, BN2 scale folded in
        # b2_ref  : (1, cp_out)            folded BN2 bias (incl. conv bias)
        # o_ref   : (th, out_w, cp_out)    one output row tile
        # h_ref   : (th, out_w, cp_in)     VMEM staging scratch (matmul LHS dtype)
        row0 = pl.program_id(1) * th
        dw_w = dw_w_ref[...]                      # (3, 3, cp_in) f32
        b1 = b1_ref[0, :]                         # (cp_in,)

        def dw_chunk(c):
            # ---- depthwise 3x3 on a register-resident row chunk (f32 acc) ----
            r0 = row0 + c * ch
            acc = jnp.zeros((ch, out_w, cp_in), jnp.float32)
            for kh in range(3):
                for kwm in range(min(s, 3)):
                    kws = [kw for kw in range(3) if kw % s == kwm]
                    if not kws:
                        continue
                    phase = (kh % s) * s + kwm
                    # one contiguous slab load per (kh, col-phase); column
                    # shifts below are in-register slices, not VMEM reloads.
                    slab = x_ref[phase, pl.ds(r0 + kh // s, ch), :, :].astype(
                        jnp.float32)
                    for kw in kws:
                        sh = kw // s
                        acc = acc + slab[:, sh:sh + out_w, :] * dw_w[kh, kw]
            # ---- folded BN1 bias + ReLU(6); single write to the LHS scratch ----
            h = acc + b1
            h = jnp.clip(h, 0.0, 6.0) if use_relu6 else jnp.maximum(h, 0.0)
            h_ref[pl.ds(c * ch, ch), :, :] = h.astype(h_ref.dtype)

        if n_chunks == 1:
            dw_chunk(0)
        else:
            def body(c, carry):
                dw_chunk(c)
                return carry
            lax.fori_loop(0, n_chunks, body, 0)

        # ---- pointwise 1x1 conv == channel matmul on the MXU ----
        hm = h_ref[...].reshape(th * out_w, cp_in)
        y = jnp.dot(hm, pw_w_ref[...], preferred_element_type=jnp.float32)

        # ---- folded BN2 bias + ReLU(6) ----
        y = y + b2_ref[0, :]
        y = jnp.clip(y, 0.0, 6.0) if use_relu6 else jnp.maximum(y, 0.0)
        o_ref[...] = y.reshape(th, out_w, cp_out).astype(o_ref.dtype)

    return kernel


# ------------------------------- wrapper ----------------------------------- #
def depthwise_sep_conv_block(x_nchw, params, *, stride=1, use_relu6=True,
                             eps=1e-5, matmul_dtype=jnp.bfloat16,
                             out_dtype=jnp.float32):
    """Forward pass of DepthwiseSepConvBlock (eval-mode BN). Input/output NCHW."""
    (dw_w, dw_cb, g1, b1, m1, v1,
     pw_w, pw_cb, g2, b2, m2, v2) = params

    N, c_in, H, W = x_nchw.shape
    c_out = pw_w.shape[0]
    s = int(stride)
    out_h = (H + 2 - 3) // s + 1
    out_w = (W + 2 - 3) // s + 1
    halo = (3 - 1) // s        # max extra row/col offset of a 3x3 tap in phase space

    cp_in = _round_up(c_in, _LANE)
    cp_out = _round_up(c_out, _LANE)

    mm_dt = jnp.dtype(matmul_dtype)
    # bf16 storage for the memory-bound input on the fast path; f32 storage for
    # the f32-matmul tight-validation path.
    store_dtype = jnp.float32 if mm_dt == jnp.dtype(jnp.float32) else jnp.bfloat16

    # ---- fold conv bias + eval-mode BN into weight scale / bias (host) ----
    s1 = g1 / jnp.sqrt(v1 + eps)
    bias1 = s1 * (dw_cb - m1) + b1
    s2 = g2 / jnp.sqrt(v2 + eps)
    bias2 = s2 * (pw_cb - m2) + b2

    dw_w_hwc = jnp.transpose(dw_w[:, 0, :, :], (1, 2, 0)) * s1            # (3,3,Cin)
    pw_w_io = jnp.transpose(pw_w[:, :, 0, 0], (1, 0)) * s2[None, :]       # (Cin,Cout)

    dw_w_p = jnp.pad(dw_w_hwc, ((0, 0), (0, 0), (0, cp_in - c_in))
                     ).astype(jnp.float32)
    pw_w_p = jnp.pad(pw_w_io, ((0, cp_in - c_in), (0, cp_out - c_out))
                     ).astype(matmul_dtype)
    b1_p = jnp.pad(bias1, (0, cp_in - c_in)).reshape(1, cp_in).astype(jnp.float32)
    b2_p = jnp.pad(bias2, (0, cp_out - c_out)).reshape(1, cp_out).astype(jnp.float32)

    # ---- NCHW -> NHWC, single fused pad (spatial halo + channel lanes) ----
    Hq = out_h + halo          # phase-space rows needed (3x3 kernel halo)
    Wq = out_w + halo          # phase-space cols needed
    x = jnp.transpose(x_nchw, (0, 2, 3, 1)).astype(store_dtype)
    pad_b = s * Hq - (H + 1)
    pad_r = s * Wq - (W + 1)
    xp = jnp.pad(x, ((0, 0), (1, max(pad_b, 0)), (1, max(pad_r, 0)),
                     (0, cp_in - c_in)))
    xp = xp[:, :s * Hq, :s * Wq, :]      # no-op unless pad_b/pad_r were clamped

    # ---- stride phase decomposition: output (i,j), tap (kh,kw) reads phase
    #      (kh%s)*s + (kw%s) at offsets (i + kh//s, j + kw//s); every in-kernel
    #      load is a contiguous slab. For s=1 this is a pure expand_dims. ----
    if s == 1:
        x_ph = xp[:, None]                                    # (N,1,Hq,Wq,cp_in)
    else:
        x_ph = (xp.reshape(N, Hq, s, Wq, s, cp_in)
                  .transpose(0, 2, 4, 1, 3, 5)
                  .reshape(N, s * s, Hq, Wq, cp_in))

    TH = _pick_row_tile(out_h, out_w)      # matmul M = TH*out_w targeted <= 1024
    CH = _pick_row_chunk(TH, Wq, cp_in)    # depthwise acc stays vreg-resident
    grid = (N, out_h // TH)

    kernel = _make_kernel(s, TH, CH, out_w, use_relu6, cp_in, cp_out)

    in_item = jnp.dtype(store_dtype).itemsize
    mm_item = mm_dt.itemsize
    out_item = jnp.dtype(out_dtype).itemsize

    # ---- scheduler hints: dtype-aware cost estimate + explicit VMEM budget ----
    flops = 2 * N * out_h * out_w * cp_in * (9 + cp_out)
    w_bytes = (dw_w_p.size * 4 + pw_w_p.size * mm_item + (cp_in + cp_out) * 4)
    bytes_accessed = int(x_ph.size * in_item
                         + N * out_h * out_w * cp_out * out_item
                         + N * w_bytes)
    cost = pl.CostEstimate(flops=flops, transcendentals=0,
                           bytes_accessed=bytes_accessed)

    vmem_est = (2 * s * s * Hq * Wq * cp_in * in_item    # double-buffered input block
                + 2 * TH * out_w * cp_out * out_item     # double-buffered output block
                + 2 * w_bytes                            # double-buffered constants
                + TH * out_w * cp_in * mm_item           # matmul-LHS staging scratch
                + TH * out_w * cp_out * 4                # f32 matmul result
                + (6 << 20))                             # compiler-internal headroom
    vmem_cap = 128 << 20
    try:
        vmem_cap = int(getattr(pltpu.get_tpu_info(), "vmem_capacity_bytes",
                               vmem_cap))
    except Exception:
        pass
    vmem_limit = int(min((vmem_cap * 3) // 4, max(32 << 20, vmem_est)))

    out_nhwc = pl.pallas_call(
        kernel,
        out_shape=jax.ShapeDtypeStruct((N, out_h, out_w, cp_out), out_dtype),
        grid=grid,
        in_specs=[
            # per-batch input stays resident across the row-tile axis
            pl.BlockSpec((None, s * s, Hq, Wq, cp_in),
                         lambda n, r: (n, 0, 0, 0, 0)),
            pl.BlockSpec((3, 3, cp_in), lambda n, r: (0, 0, 0)),
            pl.BlockSpec((1, cp_in), lambda n, r: (0, 0)),
            pl.BlockSpec((cp_in, cp_out), lambda n, r: (0, 0)),
            pl.BlockSpec((1, cp_out), lambda n, r: (0, 0)),
        ],
        out_specs=pl.BlockSpec((None, TH, out_w, cp_out),
                               lambda n, r: (n, r, 0, 0)),
        scratch_shapes=[pltpu.VMEM((TH, out_w, cp_in), matmul_dtype)],
        compiler_params=pltpu.CompilerParams(
            dimension_semantics=("parallel", "parallel"),
            vmem_limit_bytes=vmem_limit),
        cost_estimate=cost,
    )(x_ph, dw_w_p, b1_p, pw_w_p, b2_p)

    out = out_nhwc[..., :c_out]                      # drop lane padding
    return jnp.transpose(out, (0, 3, 1, 2))          # back to NCHW


# -------------------------- pure-JAX reference ----------------------------- #
def reference(x, params, *, stride=1, use_relu6=True, eps=1e-5):
    (dw_w, dw_cb, g1, b1, m1, v1,
     pw_w, pw_cb, g2, b2, m2, v2) = params
    c_in = x.shape[1]
    act = (lambda t: jnp.clip(t, 0., 6.)) if use_relu6 \
        else (lambda t: jnp.maximum(t, 0.))

    y = lax.conv_general_dilated(
        x, dw_w, (stride, stride), ((1, 1), (1, 1)),
        feature_group_count=c_in,
        dimension_numbers=('NCHW', 'OIHW', 'NCHW'))
    y = y + dw_cb[None, :, None, None]
    y = ((y - m1[None, :, None, None]) / jnp.sqrt(v1 + eps)[None, :, None, None]
         * g1[None, :, None, None] + b1[None, :, None, None])
    y = act(y)

    z = lax.conv_general_dilated(
        y, pw_w, (1, 1), ((0, 0), (0, 0)),
        dimension_numbers=('NCHW', 'OIHW', 'NCHW'))
    z = z + pw_cb[None, :, None, None]
    z = ((z - m2[None, :, None, None]) / jnp.sqrt(v2 + eps)[None, :, None, None]
         * g2[None, :, None, None] + b2[None, :, None, None])
    return act(z)


# --------------------------------- main ------------------------------------ #
if __name__ == "__main__":
    N, C_IN, C_OUT, H, W = 2, 4, 8, 16, 16

    key = jax.random.PRNGKey(0)
    ks = jax.random.split(key, 11)

    x = jax.random.normal(ks[0], (N, C_IN, H, W), jnp.float32)

    # Deterministic synthetic parameters (shapes from module __init__).
    dw_w = 0.3 * jax.random.normal(ks[1], (C_IN, 1, 3, 3), jnp.float32)
    dw_cb = 0.1 * jax.random.normal(ks[2], (C_IN,), jnp.float32)
    g1 = 1.0 + 0.1 * jax.random.normal(ks[3], (C_IN,), jnp.float32)
    b1 = 0.1 * jax.random.normal(ks[4], (C_IN,), jnp.float32)
    m1 = 0.05 * jax.random.normal(ks[5], (C_IN,), jnp.float32)
    v1 = jax.random.uniform(ks[6], (C_IN,), jnp.float32, 0.5, 1.5)

    pw_w = 0.3 * jax.random.normal(ks[7], (C_OUT, C_IN, 1, 1), jnp.float32)
    pw_cb = 0.1 * jax.random.normal(ks[8], (C_OUT,), jnp.float32)
    g2 = 1.0 + 0.1 * jax.random.normal(ks[9], (C_OUT,), jnp.float32)
    b2 = 0.1 * jax.random.normal(ks[10], (C_OUT,), jnp.float32)
    m2 = jnp.zeros((C_OUT,), jnp.float32)
    v2 = jnp.ones((C_OUT,), jnp.float32)

    params = (dw_w, dw_cb, g1, b1, m1, v1, pw_w, pw_cb, g2, b2, m2, v2)

    # --- stride=1, bf16 storage + bf16 MXU feed (default fast path) ---
    out = jax.block_until_ready(
        depthwise_sep_conv_block(x, params, stride=1, use_relu6=True))
    ref1 = jax.block_until_ready(reference(x, params, stride=1, use_relu6=True))
    np.testing.assert_allclose(np.asarray(out), np.asarray(ref1),
                               rtol=2e-2, atol=2e-2)
    assert out.shape == (N, C_OUT, H, W)

    # --- stride=1, f32 storage + f32 matmul: tight check of folding/indexing ---
    out32 = jax.block_until_ready(
        depthwise_sep_conv_block(x, params, stride=1, use_relu6=True,
                                 matmul_dtype=jnp.float32))
    np.testing.assert_allclose(np.asarray(out32), np.asarray(ref1),
                               rtol=1e-4, atol=1e-4)

    # --- stride=2 path (phase-decomposed input, contiguous slab loads only) ---
    out_s2 = jax.block_until_ready(
        depthwise_sep_conv_block(x, params, stride=2, use_relu6=True))
    ref2 = jax.block_until_ready(reference(x, params, stride=2, use_relu6=True))
    np.testing.assert_allclose(np.asarray(out_s2), np.asarray(ref2),
                               rtol=2e-2, atol=2e-2)
    assert out_s2.shape == (N, C_OUT, H // 2, W // 2)

    print("KERNEL_OK")
</pallas_src>

<mosaic_0001>
module attributes {stable_mosaic.version = 11 : i64} {
  func.func @kernel(%arg0: i32, %arg1: i32, %arg2: memref<1x1x18x18x128xbf16, #tpu.memory_space<vmem>>, %arg3: memref<3x3x128xf32, #tpu.memory_space<vmem>>, %arg4: memref<1x128xf32, #tpu.memory_space<vmem>>, %arg5: memref<128x128xbf16, #tpu.memory_space<vmem>>, %arg6: memref<1x128xf32, #tpu.memory_space<vmem>>, %arg7: memref<1x16x16x128xf32, #tpu.memory_space<vmem>>, %arg8: memref<16x16x128xbf16, #tpu.memory_space<vmem>>) attributes {dimension_semantics = [#tpu.dimension_semantics<parallel>, #tpu.dimension_semantics<parallel>], iteration_bounds = array<i64: 2, 1>, scalar_prefetch = 0 : i64, scratch_operands = 1 : i64, tpu.core_type = #tpu.core_type<tc>, window_params = [{transform_indices = @transform_0, window_bounds = array<i64: 1, 1, 18, 18, 128>}, {pipeline_mode = #tpu.pipeline_mode<synchronous>, transform_indices = @transform_1, window_bounds = array<i64: 3, 3, 128>}, {pipeline_mode = #tpu.pipeline_mode<synchronous>, transform_indices = @transform_2, window_bounds = array<i64: 1, 128>}, {pipeline_mode = #tpu.pipeline_mode<synchronous>, transform_indices = @transform_3, window_bounds = array<i64: 128, 128>}, {pipeline_mode = #tpu.pipeline_mode<synchronous>, transform_indices = @transform_4, window_bounds = array<i64: 1, 128>}, {transform_indices = @transform_5, window_bounds = array<i64: 1, 16, 16, 128>}]} {
    %c16_i32 = arith.constant 16 : i32
    %0 = arith.muli %arg1, %c16_i32 : i32
    %c0 = arith.constant 0 : index
    %c0_0 = arith.constant 0 : index
    %c0_1 = arith.constant 0 : index
    %1 = vector.load %arg3[%c0, %c0_0, %c0_1] : memref<3x3x128xf32, #tpu.memory_space<vmem>>, vector<3x3x128xf32>
    %c0_2 = arith.constant 0 : index
    %c0_3 = arith.constant 0 : index
    %2 = vector.load %arg4[%c0_2, %c0_3] : memref<1x128xf32, #tpu.memory_space<vmem>>, vector<1x128xf32>
    %3 = vector.shape_cast %2 : vector<1x128xf32> to vector<128xf32>
    %c0_i32 = arith.constant 0 : i32
    %c2_i32 = arith.constant 2 : i32
    %4 = arith.addi %c0_i32, %c2_i32 : i32
    %c1_i32 = arith.constant 1 : i32
    scf.for %arg9 = %c0_i32 to %4 step %c1_i32  : i32 {
      %c8_i32 = arith.constant 8 : i32
      %22 = arith.muli %arg9, %c8_i32 : i32
      %23 = arith.addi %0, %22 : i32
      %cst_18 = arith.constant 0.000000e+00 : f32
      %24 = vector.broadcast %cst_18 : f32 to vector<8x16x128xf32>
      %c0_i32_19 = arith.constant 0 : i32
      %25 = arith.addi %23, %c0_i32_19 : i32
      %c0_20 = arith.constant 0 : index
      %c0_21 = arith.constant 0 : index
      %26 = arith.index_cast %25 : i32 to index
      %c0_22 = arith.constant 0 : index
      %c0_23 = arith.constant 0 : index
      %27 = vector.load %arg2[%c0_20, %c0_21, %26, %c0_22, %c0_23] : memref<1x1x18x18x128xbf16, #tpu.memory_space<vmem>>, vector<1x1x8x18x128xbf16>
      %28 = vector.shape_cast %27 : vector<1x1x8x18x128xbf16> to vector<8x18x128xbf16>
      %29 = arith.extf %28 : vector<8x18x128xbf16> to vector<8x18x128xf32>
      %30 = vector.extract_strided_slice %29 {offsets = [0, 0, 0], sizes = [8, 16, 128], strides = [1, 1, 1]} : vector<8x18x128xf32> to vector<8x16x128xf32>
      %31 = vector.extract_strided_slice %1 {offsets = [0, 0, 0], sizes = [1, 1, 128], strides = [1, 1, 1]} : vector<3x3x128xf32> to vector<1x1x128xf32>
      %32 = vector.shape_cast %31 : vector<1x1x128xf32> to vector<128xf32>
      %33 = vector.shape_cast %32 : vector<128xf32> to vector<1x1x128xf32>
      %34 = vector.broadcast %33 : vector<1x1x128xf32> to vector<8x16x128xf32>
      %35 = arith.mulf %30, %34 : vector<8x16x128xf32>
      %36 = arith.addf %24, %35 : vector<8x16x128xf32>
      %37 = vector.extract_strided_slice %29 {offsets = [0, 1, 0], sizes = [8, 16, 128], strides = [1, 1, 1]} : vector<8x18x128xf32> to vector<8x16x128xf32>
      %38 = vector.extract_strided_slice %1 {offsets = [0, 1, 0], sizes = [1, 1, 128], strides = [1, 1, 1]} : vector<3x3x128xf32> to vector<1x1x128xf32>
      %39 = vector.shape_cast %38 : vector<1x1x128xf32> to vector<128xf32>
      %40 = vector.shape_cast %39 : vector<128xf32> to vector<1x1x128xf32>
      %41 = vector.broadcast %40 : vector<1x1x128xf32> to vector<8x16x128xf32>
      %42 = arith.mulf %37, %41 : vector<8x16x128xf32>
      %43 = arith.addf %36, %42 : vector<8x16x128xf32>
      %44 = vector.extract_strided_slice %29 {offsets = [0, 2, 0], sizes = [8, 16, 128], strides = [1, 1, 1]} : vector<8x18x128xf32> to vector<8x16x128xf32>
      %45 = vector.extract_strided_slice %1 {offsets = [0, 2, 0], sizes = [1, 1, 128], strides = [1, 1, 1]} : vector<3x3x128xf32> to vector<1x1x128xf32>
      %46 = vector.shape_cast %45 : vector<1x1x128xf32> to vector<128xf32>
      %47 = vector.shape_cast %46 : vector<128xf32> to vector<1x1x128xf32>
      %48 = vector.broadcast %47 : vector<1x1x128xf32> to vector<8x16x128xf32>
      %49 = arith.mulf %44, %48 : vector<8x16x128xf32>
      %50 = arith.addf %43, %49 : vector<8x16x128xf32>
      %c1_i32_24 = arith.constant 1 : i32
      %51 = arith.addi %23, %c1_i32_24 : i32
      %c0_25 = arith.constant 0 : index
      %c0_26 = arith.constant 0 : index
      %52 = arith.index_cast %51 : i32 to index
      %c0_27 = arith.constant 0 : index
      %c0_28 = arith.constant 0 : index
      %53 = vector.load %arg2[%c0_25, %c0_26, %52, %c0_27, %c0_28] : memref<1x1x18x18x128xbf16, #tpu.memory_space<vmem>>, vector<1x1x8x18x128xbf16>
      %54 = vector.shape_cast %53 : vector<1x1x8x18x128xbf16> to vector<8x18x128xbf16>
      %55 = arith.extf %54 : vector<8x18x128xbf16> to vector<8x18x128xf32>
      %56 = vector.extract_strided_slice %55 {offsets = [0, 0, 0], sizes = [8, 16, 128], strides = [1, 1, 1]} : vector<8x18x128xf32> to vector<8x16x128xf32>
      %57 = vector.extract_strided_slice %1 {offsets = [1, 0, 0], sizes = [1, 1, 128], strides = [1, 1, 1]} : vector<3x3x128xf32> to vector<1x1x128xf32>
      %58 = vector.shape_cast %57 : vector<1x1x128xf32> to vector<128xf32>
      %59 = vector.shape_cast %58 : vector<128xf32> to vector<1x1x128xf32>
      %60 = vector.broadcast %59 : vector<1x1x128xf32> to vector<8x16x128xf32>
      %61 = arith.mulf %56, %60 : vector<8x16x128xf32>
      %62 = arith.addf %50, %61 : vector<8x16x128xf32>
      %63 = vector.extract_strided_slice %55 {offsets = [0, 1, 0], sizes = [8, 16, 128], strides = [1, 1, 1]} : vector<8x18x128xf32> to vector<8x16x128xf32>
      %64 = vector.extract_strided_slice %1 {offsets = [1, 1, 0], sizes = [1, 1, 128], strides = [1, 1, 1]} : vector<3x3x128xf32> to vector<1x1x128xf32>
      %65 = vector.shape_cast %64 : vector<1x1x128xf32> to vector<128xf32>
      %66 = vector.shape_cast %65 : vector<128xf32> to vector<1x1x128xf32>
      %67 = vector.broadcast %66 : vector<1x1x128xf32> to vector<8x16x128xf32>
      %68 = arith.mulf %63, %67 : vector<8x16x128xf32>
      %69 = arith.addf %62, %68 : vector<8x16x128xf32>
      %70 = vector.extract_strided_slice %55 {offsets = [0, 2, 0], sizes = [8, 16, 128], strides = [1, 1, 1]} : vector<8x18x128xf32> to vector<8x16x128xf32>
      %71 = vector.extract_strided_slice %1 {offsets = [1, 2, 0], sizes = [1, 1, 128], strides = [1, 1, 1]} : vector<3x3x128xf32> to vector<1x1x128xf32>
      %72 = vector.shape_cast %71 : vector<1x1x128xf32> to vector<128xf32>
      %73 = vector.shape_cast %72 : vector<128xf32> to vector<1x1x128xf32>
      %74 = vector.broadcast %73 : vector<1x1x128xf32> to vector<8x16x128xf32>
      %75 = arith.mulf %70, %74 : vector<8x16x128xf32>
      %76 = arith.addf %69, %75 : vector<8x16x128xf32>
      %c2_i32_29 = arith.constant 2 : i32
      %77 = arith.addi %23, %c2_i32_29 : i32
      %c0_30 = arith.constant 0 : index
      %c0_31 = arith.constant 0 : index
      %78 = arith.index_cast %77 : i32 to index
      %c0_32 = arith.constant 0 : index
      %c0_33 = arith.constant 0 : index
      %79 = vector.load %arg2[%c0_30, %c0_31, %78, %c0_32, %c0_33] : memref<1x1x18x18x128xbf16, #tpu.memory_space<vmem>>, vector<1x1x8x18x128xbf16>
      %80 = vector.shape_cast %79 : vector<1x1x8x18x128xbf16> to vector<8x18x128xbf16>
      %81 = arith.extf %80 : vector<8x18x128xbf16> to vector<8x18x128xf32>
      %82 = vector.extract_strided_slice %81 {offsets = [0, 0, 0], sizes = [8, 16, 128], strides = [1, 1, 1]} : vector<8x18x128xf32> to vector<8x16x128xf32>
      %83 = vector.extract_strided_slice %1 {offsets = [2, 0, 0], sizes = [1, 1, 128], strides = [1, 1, 1]} : vector<3x3x128xf32> to vector<1x1x128xf32>
      %84 = vector.shape_cast %83 : vector<1x1x128xf32> to vector<128xf32>
      %85 = vector.shape_cast %84 : vector<128xf32> to vector<1x1x128xf32>
      %86 = vector.broadcast %85 : vector<1x1x128xf32> to vector<8x16x128xf32>
      %87 = arith.mulf %82, %86 : vector<8x16x128xf32>
      %88 = arith.addf %76, %87 : vector<8x16x128xf32>
      %89 = vector.extract_strided_slice %81 {offsets = [0, 1, 0], sizes = [8, 16, 128], strides = [1, 1, 1]} : vector<8x18x128xf32> to vector<8x16x128xf32>
      %90 = vector.extract_strided_slice %1 {offsets = [2, 1, 0], sizes = [1, 1, 128], strides = [1, 1, 1]} : vector<3x3x128xf32> to vector<1x1x128xf32>
      %91 = vector.shape_cast %90 : vector<1x1x128xf32> to vector<128xf32>
      %92 = vector.shape_cast %91 : vector<128xf32> to vector<1x1x128xf32>
      %93 = vector.broadcast %92 : vector<1x1x128xf32> to vector<8x16x128xf32>
      %94 = arith.mulf %89, %93 : vector<8x16x128xf32>
      %95 = arith.addf %88, %94 : vector<8x16x128xf32>
      %96 = vector.extract_strided_slice %81 {offsets = [0, 2, 0], sizes = [8, 16, 128], strides = [1, 1, 1]} : vector<8x18x128xf32> to vector<8x16x128xf32>
      %97 = vector.extract_strided_slice %1 {offsets = [2, 2, 0], sizes = [1, 1, 128], strides = [1, 1, 1]} : vector<3x3x128xf32> to vector<1x1x128xf32>
      %98 = vector.shape_cast %97 : vector<1x1x128xf32> to vector<128xf32>
      %99 = vector.shape_cast %98 : vector<128xf32> to vector<1x1x128xf32>
      %100 = vector.broadcast %99 : vector<1x1x128xf32> to vector<8x16x128xf32>
      %101 = arith.mulf %96, %100 : vector<8x16x128xf32>
      %102 = arith.addf %95, %101 : vector<8x16x128xf32>
      %103 = vector.shape_cast %3 : vector<128xf32> to vector<1x1x128xf32>
      %104 = vector.broadcast %103 : vector<1x1x128xf32> to vector<8x16x128xf32>
      %105 = arith.addf %102, %104 : vector<8x16x128xf32>
      %cst_34 = arith.constant 0.000000e+00 : f32
      %cst_35 = arith.constant 6.000000e+00 : f32
      %106 = vector.broadcast %cst_34 : f32 to vector<8x16x128xf32>
      %107 = arith.maximumf %106, %105 : vector<8x16x128xf32>
      %108 = vector.broadcast %cst_35 : f32 to vector<8x16x128xf32>
      %109 = arith.minimumf %108, %107 : vector<8x16x128xf32>
      %110 = arith.truncf %109 : vector<8x16x128xf32> to vector<8x16x128xbf16>
      %c8_i32_36 = arith.constant 8 : i32
      %111 = arith.muli %arg9, %c8_i32_36 : i32
      %112 = arith.index_cast %111 : i32 to index
      %c0_37 = arith.constant 0 : index
      %c0_38 = arith.constant 0 : index
      %113 = vector.load %arg8[%112, %c0_37, %c0_38] : memref<16x16x128xbf16, #tpu.memory_space<vmem>>, vector<8x16x128xbf16>
      tpu.vector_store %arg8[%112, %c0_37, %c0_38], %110 {strides = array<i32>} : memref<16x16x128xbf16, #tpu.memory_space<vmem>>, vector<8x16x128xbf16>,
    }
    %c2_i32_4 = arith.constant 2 : i32
    %c0_5 = arith.constant 0 : index
    %c0_6 = arith.constant 0 : index
    %c0_7 = arith.constant 0 : index
    %5 = vector.load %arg8[%c0_5, %c0_6, %c0_7] : memref<16x16x128xbf16, #tpu.memory_space<vmem>>, vector<16x16x128xbf16>
    %6 = vector.shape_cast %5 : vector<16x16x128xbf16> to vector<256x128xbf16>
    %c0_8 = arith.constant 0 : index
    %c0_9 = arith.constant 0 : index
    %7 = vector.load %arg5[%c0_8, %c0_9] : memref<128x128xbf16, #tpu.memory_space<vmem>>, vector<128x128xbf16>
    %cst = arith.constant dense<0.000000e+00> : vector<256x128xf32>
    %8 = tpu.matmul %6, %7, %cst {dimension_numbers = #tpu.dot_dimension_numbers<[1], [0], [0], [1], [0, 0, 1, 1], [], []>} : vector<256x128xbf16>, vector<128x128xbf16>, vector<256x128xf32> -> vector<256x128xf32>
    %c0_10 = arith.constant 0 : index
    %c0_11 = arith.constant 0 : index
    %9 = vector.load %arg6[%c0_10, %c0_11] : memref<1x128xf32, #tpu.memory_space<vmem>>, vector<1x128xf32>
    %10 = vector.shape_cast %9 : vector<1x128xf32> to vector<128xf32>
    %11 = vector.shape_cast %10 : vector<128xf32> to vector<1x128xf32>
    %12 = vector.broadcast %11 : vector<1x128xf32> to vector<256x128xf32>
    %13 = arith.addf %8, %12 : vector<256x128xf32>
    %cst_12 = arith.constant 0.000000e+00 : f32
    %cst_13 = arith.constant 6.000000e+00 : f32
    %14 = vector.broadcast %cst_12 : f32 to vector<256x128xf32>
    %15 = arith.maximumf %14, %13 : vector<256x128xf32>
    %16 = vector.broadcast %cst_13 : f32 to vector<256x128xf32>
    %17 = arith.minimumf %16, %15 : vector<256x128xf32>
    %18 = vector.shape_cast %17 : vector<256x128xf32> to vector<16x16x128xf32>
    %c0_14 = arith.constant 0 : index
    %c0_15 = arith.constant 0 : index
    %c0_16 = arith.constant 0 : index
    %c0_17 = arith.constant 0 : index
    %19 = vector.load %arg7[%c0_14, %c0_15, %c0_16, %c0_17] : memref<1x16x16x128xf32, #tpu.memory_space<vmem>>, vector<1x16x16x128xf32>
    %20 = vector.shape_cast %19 : vector<1x16x16x128xf32> to vector<16x16x128xf32>
    %21 = vector.shape_cast %18 : vector<16x16x128xf32> to vector<1x16x16x128xf32>
    tpu.vector_store %arg7[%c0_14, %c0_15, %c0_16, %c0_17], %21 {strides = array<i32>} : memref<1x16x16x128xf32, #tpu.memory_space<vmem>>, vector<1x16x16x128xf32>,
    return
  }
  func.func @transform_0(%arg0: i32, %arg1: i32) -> (i32, i32, i32, i32, i32) {
    %c0_i32 = arith.constant 0 : i32
    %c0_i32_0 = arith.constant 0 : i32
    %c0_i32_1 = arith.constant 0 : i32
    %c0_i32_2 = arith.constant 0 : i32
    %c0_i32_3 = arith.constant 0 : i32
    return %arg0, %c0_i32, %c0_i32_0, %c0_i32_1, %c0_i32_2 : i32, i32, i32, i32, i32
  }
  func.func @transform_1(%arg0: i32, %arg1: i32) -> (i32, i32, i32) {
    %c0_i32 = arith.constant 0 : i32
    %c0_i32_0 = arith.constant 0 : i32
    %c0_i32_1 = arith.constant 0 : i32
    %c0_i32_2 = arith.constant 0 : i32
    return %c0_i32, %c0_i32_0, %c0_i32_1 : i32, i32, i32
  }
  func.func @transform_2(%arg0: i32, %arg1: i32) -> (i32, i32) {
    %c0_i32 = arith.constant 0 : i32
    %c0_i32_0 = arith.constant 0 : i32
    %c0_i32_1 = arith.constant 0 : i32
    return %c0_i32, %c0_i32_0 : i32, i32
  }
  func.func @transform_3(%arg0: i32, %arg1: i32) -> (i32, i32) {
    %c0_i32 = arith.constant 0 : i32
    %c0_i32_0 = arith.constant 0 : i32
    %c0_i32_1 = arith.constant 0 : i32
    return %c0_i32, %c0_i32_0 : i32, i32
  }
  func.func @transform_4(%arg0: i32, %arg1: i32) -> (i32, i32) {
    %c0_i32 = arith.constant 0 : i32
    %c0_i32_0 = arith.constant 0 : i32
    %c0_i32_1 = arith.constant 0 : i32
    return %c0_i32, %c0_i32_0 : i32, i32
  }
  func.func @transform_5(%arg0: i32, %arg1: i32) -> (i32, i32, i32, i32) {
    %c0_i32 = arith.constant 0 : i32
    %c0_i32_0 = arith.constant 0 : i32
    %c0_i32_1 = arith.constant 0 : i32
    return %arg0, %arg1, %c0_i32, %c0_i32_0 : i32, i32, i32, i32
  }
}

</mosaic_0001>

<llo_original>
// kernel: tpu_custom_call.1
$region0: #{tpu_custom_call.1}
  #allocation0 [shape = 'u32[]', space=smem, size = 0x4, offset = 0x4, fixed_abs, tag = 'smem constant byte address 0x4 - core index']
  #allocation1 [shape = 'u32[144,128]{1,0:T(1,128)}', space=vmem, size = 0x12000, scoped, tag = 'internal scratch']
  #allocation2 [shape = 'bf16[16,16,128]{2,1,0:T(8,128)(2,1)}', space=vmem, size = 0x10000, scoped, tag = 'scratch operand']
  %s0 = inlined_call_operand.vmem [shape: bf16[2,1,18,18,128], index: 0, kind: input, shape index: {}]
  %s1 = inlined_call_operand.vmem [shape: f32[3,3,128], index: 1, kind: input, shape index: {}]
  %s2 = inlined_call_operand.vmem [shape: f32[1,128], index: 2, kind: input, shape index: {}]
  %s3 = inlined_call_operand.vmem [shape: bf16[128,128], index: 3, kind: input, shape index: {}]
  %s4 = inlined_call_operand.vmem [shape: f32[1,128], index: 4, kind: input, shape index: {}]
  %s5 = inlined_call_operand.hbm [shape: f32[2,16,16,128], index: 5, kind: output, shape index: {}]
  %s6 = sld [smem:[#allocation0]]
  $region60: #{tpu_custom_call.1} parent=0
    _
  %s8 = ssub.s32 1, %s6
  %s9 = scalar_select 0, %s8, %s6
  $region1: #{tpu_custom_call.1} parent=0
    #allocation3 [shape = 'u8[262144]{0}', space=vmem, size = 0x40000, scoped, tag = 'output window, operand 0']
    #allocation4 [shape = 's32[2]{0}', space=sflag, size = 0x8, scoped, tag = 'scoped memory for tpu_custom_call.1']
    %10 = vsyncpa [#allocation4], 0
    %s11 = scalar_lea.sflag [#allocation4], 1
    %12 = vsyncpa %s11, 0
    loop: start=0, step=1, limit=4
    $region2: #{tpu_custom_call.1} parent=1 // loop_pre_header
      _
    $region3: #{tpu_custom_call.1} parent=1 // loop_header
      %s14 = sphi 0, %s18
      %p15 = scmp.ge.s32.totalorder %s14, 4
      %s21 = sphi 0, %s33
      %s22 = sphi 0, %s29
      %s23 = sphi 0, %s21
      %s24 = sphi 0, %s22
      %s25 = sphi 0, %s23
      %s26 = sphi 0, %s24
      %s36 = sphi 0, %s38
      %s39 = sphi 0, %s36
      %s40 = sphi 0, %s39
      %s56 = sphi 0, %s40
      %s60 = sphi 0, %s60
      %s62 = sphi 0, %s60
      %s63 = sphi 0, %s62
      %s77 = sphi 0, %s63
      %s81 = sphi 0, %s81
      %s83 = sphi 0, %s81
      %s84 = sphi 0, %s83
      %s98 = sphi 0, %s84
      %s102 = sphi 0, %s102
      %s104 = sphi 0, %s102
      %s105 = sphi 0, %s104
      %s119 = sphi 0, %s105
      %s123 = sphi 0, %s123
      %s125 = sphi 0, %s123
      %s126 = sphi 0, %s125
      %s140 = sphi 0, %s126
      %s148 = sphi 0, %s150
      %s151 = sphi 0, %s148
      %s152 = sphi 0, %s151
      %s168 = sphi 0, %s152
    $region4: #{tpu_custom_call.1} parent=1 // loop_header_branch
      %17 = sbr.rel (%p15) target = $region8
    $region5: #{tpu_custom_call.1} parent=1 // loop_body
      %s19 = ssub.s32 %s14, 1
      %s20 = ssub.s32 %s14, 2
      %s27 = sadd.s32 1, %s22
      %p28 = scmp.ge.s32.totalorder %s27, 1
      %s29 = scalar_select %p28, 0, %s27
      %s30 = sadd.s32 1, %s21
      %s31 = scalar_select %p28, %s30, %s21
      %p32 = scmp.ge.s32.totalorder %s31, 2
      %s33 = scalar_select %p32, 0, %s31
      %s34 = ssub.s32 %s21, %s33
      %p35 = scmp.eq.s32.totalorder %s34, 0
      %s37 = sadd.s32 %s36, 1
      %s38 = scalar_select %p35, %s36, %s37
      %p41 = pneg %p35
      %p42 = scmp.eq.s32.totalorder %s14, 1
      %p43 = por %p41, %p42
      %p44 = scmp.ne.s32.totalorder %s36, %s39
      %p45 = scmp.eq.s32.totalorder %s14, 0
      %p46 = por %p44, %p45
      %p47 = scmp.ne.s32.totalorder %s36, %s39
      %p48 = scmp.eq.s32.totalorder %s19, 1
      %p49 = por %p47, %p48
      %p50 = scmp.ne.s32.totalorder %s39, %s40
      %p51 = scmp.eq.s32.totalorder %s19, 0
      %p52 = por %p50, %p51
      %p53 = scmp.ne.s32.totalorder %s39, %s40
      %p54 = scmp.eq.s32.totalorder %s20, 1
      %p55 = por %p53, %p54
      %p57 = scmp.ne.s32.totalorder %s40, %s56
      %p58 = scmp.eq.s32.totalorder %s20, 0
      %p59 = por %p57, %p58
      %s61 = sadd.s32 %s60, 1
      %p64 = scmp.eq.s32.totalorder %s14, 1
      %p65 = scmp.ne.s32.totalorder %s60, %s62
      %p66 = scmp.eq.s32.totalorder %s14, 0
      %p67 = por %p65, %p66
      %p68 = scmp.ne.s32.totalorder %s60, %s62
      %p69 = scmp.eq.s32.totalorder %s19, 1
      %p70 = por %p68, %p69
      %p71 = scmp.ne.s32.totalorder %s62, %s63
      %p72 = scmp.eq.s32.totalorder %s19, 0
      %p73 = por %p71, %p72
      %p74 = scmp.ne.s32.totalorder %s62, %s63
      %p75 = scmp.eq.s32.totalorder %s20, 1
      %p76 = por %p74, %p75
      %p78 = scmp.ne.s32.totalorder %s63, %s77
      %p79 = scmp.eq.s32.totalorder %s20, 0
      %p80 = por %p78, %p79
      %s82 = sadd.s32 %s81, 1
      %p85 = scmp.eq.s32.totalorder %s14, 1
      %p86 = scmp.ne.s32.totalorder %s81, %s83
      %p87 = scmp.eq.s32.totalorder %s14, 0
      %p88 = por %p86, %p87
      %p89 = scmp.ne.s32.totalorder %s81, %s83
      %p90 = scmp.eq.s32.totalorder %s19, 1
      %p91 = por %p89, %p90
      %p92 = scmp.ne.s32.totalorder %s83, %s84
      %p93 = scmp.eq.s32.totalorder %s19, 0
      %p94 = por %p92, %p93
      %p95 = scmp.ne.s32.totalorder %s83, %s84
      %p96 = scmp.eq.s32.totalorder %s20, 1
      %p97 = por %p95, %p96
      %p99 = scmp.ne.s32.totalorder %s84, %s98
      %p100 = scmp.eq.s32.totalorder %s20, 0
      %p101 = por %p99, %p100
      %s103 = sadd.s32 %s102, 1
      %p106 = scmp.eq.s32.totalorder %s14, 1
      %p107 = scmp.ne.s32.totalorder %s102, %s104
      %p108 = scmp.eq.s32.totalorder %s14, 0
      %p109 = por %p107, %p108
      %p110 = scmp.ne.s32.totalorder %s102, %s104
      %p111 = scmp.eq.s32.totalorder %s19, 1
      %p112 = por %p110, %p111
      %p113 = scmp.ne.s32.totalorder %s104, %s105
      %p114 = scmp.eq.s32.totalorder %s19, 0
      %p115 = por %p113, %p114
      %p116 = scmp.ne.s32.totalorder %s104, %s105
      %p117 = scmp.eq.s32.totalorder %s20, 1
      %p118 = por %p116, %p117
      %p120 = scmp.ne.s32.totalorder %s105, %s119
      %p121 = scmp.eq.s32.totalorder %s20, 0
      %p122 = por %p120, %p121
      %s124 = sadd.s32 %s123, 1
      %p127 = scmp.eq.s32.totalorder %s14, 1
      %p128 = scmp.ne.s32.totalorder %s123, %s125
      %p129 = scmp.eq.s32.totalorder %s14, 0
      %p130 = por %p128, %p129
      %p131 = scmp.ne.s32.totalorder %s123, %s125
      %p132 = scmp.eq.s32.totalorder %s19, 1
      %p133 = por %p131, %p132
      %p134 = scmp.ne.s32.totalorder %s125, %s126
      %p135 = scmp.eq.s32.totalorder %s19, 0
      %p136 = por %p134, %p135
      %p137 = scmp.ne.s32.totalorder %s125, %s126
      %p138 = scmp.eq.s32.totalorder %s20, 1
      %p139 = por %p137, %p138
      %p141 = scmp.ne.s32.totalorder %s126, %s140
      %p142 = scmp.eq.s32.totalorder %s20, 0
      %p143 = por %p141, %p142
      %s144 = ssub.s32 %s21, %s33
      %s145 = ssub.s32 %s22, %s29
      %s146 = sor.u32 %s144, %s145
      %p147 = scmp.eq.s32.totalorder %s146, 0
      %s149 = sadd.s32 %s148, 1
      %s150 = scalar_select %p147, %s148, %s149
      %p153 = pneg %p147
      %p154 = scmp.eq.s32.totalorder %s14, 1
      %p155 = por %p153, %p154
      %p156 = scmp.ne.s32.totalorder %s148, %s151
      %p157 = scmp.eq.s32.totalorder %s14, 0
      %p158 = por %p156, %p157
      %p159 = scmp.ne.s32.totalorder %s148, %s151
      %p160 = scmp.eq.s32.totalorder %s19, 1
      %p161 = por %p159, %p160
      %p162 = scmp.ne.s32.totalorder %s151, %s152
      %p163 = scmp.eq.s32.totalorder %s19, 0
      %p164 = por %p162, %p163
      %p165 = scmp.ne.s32.totalorder %s151, %s152
      %p166 = scmp.eq.s32.totalorder %s20, 1
      %p167 = por %p165, %p166
      %p169 = scmp.ne.s32.totalorder %s152, %s168
      %p170 = scmp.eq.s32.totalorder %s20, 0
      %p171 = por %p169, %p170
      %p172 = scmp.le.s32.totalorder 1, %s14
      %p173 = scmp.lt.s32.totalorder %s14, 3
      %p174 = pnand %p172, %p173
      %p175 = pneg %p174
      // Predicated region
      $region9: #{tpu_custom_call.1} parent=5 // pred_check
        _
      $region10: #{tpu_custom_call.1} parent=5 // pred_check_branch
        %177 = sbr.rel (%p174) target = $region12
      $region11: #{tpu_custom_call.1} parent=5 // pred_region
        %s178 = ssub.s32 %s14, 1
        // Predicated region
        $region13: #{tpu_custom_call.1} parent=11 // pred_check
          %p179 = pneg %p73
        $region14: #{tpu_custom_call.1} parent=11 // pred_check_branch
          %181 = sbr.rel (%p179) target = $region16
        $region15: #{tpu_custom_call.1} parent=11 // pred_region
          _
        $region16: #{tpu_custom_call.1} parent=11 // pred_fallthru
          _
        // Predicated region
        $region17: #{tpu_custom_call.1} parent=11 // pred_check
          %p182 = pneg %p94
        $region18: #{tpu_custom_call.1} parent=11 // pred_check_branch
          %184 = sbr.rel (%p182) target = $region20
        $region19: #{tpu_custom_call.1} parent=11 // pred_region
          _
        $region20: #{tpu_custom_call.1} parent=11 // pred_fallthru
          _
        // Predicated region
        $region21: #{tpu_custom_call.1} parent=11 // pred_check
          %p185 = pneg %p115
        $region22: #{tpu_custom_call.1} parent=11 // pred_check_branch
          %187 = sbr.rel (%p185) target = $region24
        $region23: #{tpu_custom_call.1} parent=11 // pred_region
          _
        $region24: #{tpu_custom_call.1} parent=11 // pred_fallthru
          _
        // Predicated region
        $region25: #{tpu_custom_call.1} parent=11 // pred_check
          %p188 = pneg %p136
        $region26: #{tpu_custom_call.1} parent=11 // pred_check_branch
          %190 = sbr.rel (%p188) target = $region28
        $region27: #{tpu_custom_call.1} parent=11 // pred_region
          _
        $region28: #{tpu_custom_call.1} parent=11 // pred_fallthru
          _
      $region12: #{tpu_custom_call.1} parent=5 // pred_fallthru
        _
      %p191 = scmp.lt.s32.totalorder %s14, 2
      // Predicated region
      $region29: #{tpu_custom_call.1} parent=5 // pred_check
        %p192 = pneg %p191
      $region30: #{tpu_custom_call.1} parent=5 // pred_check_branch
        %194 = sbr.rel (%p192) target = $region32
      $region31: #{tpu_custom_call.1} parent=5 // pred_region
        // Predicated region
        $region33: #{tpu_custom_call.1} parent=31 // pred_check
          %p195 = pneg %p46
        $region34: #{tpu_custom_call.1} parent=31 // pred_check_branch
          %197 = sbr.rel (%p195) target = $region36
        $region35: #{tpu_custom_call.1} parent=31 // pred_region
          %p198 = scmp.lt.s32.totalorder %s21, 1
          %s199 = scalar_select %p198, %s21, 1
          %s200 = smul.addr %s199, 54
          %s201 = smul.addr %s200, 4
          %s202 = scalar_lea.vmem %s0, %s201
        $region36: #{tpu_custom_call.1} parent=31 // pred_fallthru
          _
      $region32: #{tpu_custom_call.1} parent=5 // pred_fallthru
        _
      %p203 = scmp.le.s32.totalorder 1, %s14
      %p204 = scmp.lt.s32.totalorder %s14, 3
      %p205 = pnand %p203, %p204
      %p206 = pneg %p205
      // Predicated region
      $region37: #{tpu_custom_call.1} parent=5 // pred_check
        _
      $region38: #{tpu_custom_call.1} parent=5 // pred_check_branch
        %208 = sbr.rel (%p205) target = $region40
      $region39: #{tpu_custom_call.1} parent=5 // pred_region
        %s209 = ssub.s32 %s14, 1
        %p210 = scmp.lt.s32.totalorder %s23, 1
        %s211 = scalar_select %p210, %s23, 1
        %s212 = smul.addr %s211, 54
        %s213 = smul.addr %s212, 4
        %s214 = scalar_lea.vmem %s0, %s213
        %p215 = pneg %p52
        %p216 = pneg %p49
        %p217 = pneg %p73
        %p218 = pneg %p70
        %p219 = pneg %p94
        %p220 = pneg %p91
        %p221 = pneg %p115
        %p222 = pneg %p112
        %p223 = pneg %p136
        %p224 = pneg %p133
        %p225 = pneg %p164
        %p226 = pneg %p161
        %s227 = sand.u32 %s151, 1
        %s228 = scalar_lea.sflag [#allocation4], %s227
        %s229 = sand.u32 %s151, 1
        %s230 = smul.addr %s229, 256
        %s231 = scalar_lea.vmem [#allocation3], %s230
        %p232 = scmp.lt.s32.totalorder %s23, 1
        %s233 = scalar_select %p232, %s23, 1
        %s234 = smul.addr %s233, 54
        %s235 = smul.addr %s234, 4
        %s236 = scalar_lea.vmem %s0, %s235
        %s237 = smul.u32 16, %s24
        %s239 = smul.u32 %s24, 16
        %v240 = vld [vmem:[%s1] sm:$0x7]
        %v241 = vld [vmem:[%s1 + $0x4] sm:$0x7]
        %v242 = vld [vmem:[%s1 + $0x8] sm:$0x7]
        %v243 = vld [vmem:[%s2] sm:$0x1]
        loop: start=0, step=1, limit=2
        $region41: #{tpu_custom_call.1} parent=39 // loop_pre_header
          _
        $region42: #{tpu_custom_call.1} parent=39 // loop_header
          %s245 = sphi 0, %s249
          %p246 = scmp.ge.s32.totalorder %s245, 2
        $region43: #{tpu_custom_call.1} parent=39 // loop_header_branch
          %248 = sbr.rel (%p246) target = $region47
        $region44: #{tpu_custom_call.1} parent=39 // loop_body
          %s250 = smul.u32 %s245, 8
          %s251 = sadd.s32 %s239, %s250
          %s252 = smul.u32 %s251, 3
          %s253 = smul.addr %s252, 4
          %s254 = scalar_lea.vmem %s236, %s253
          %v255 = vld [vmem:[%s254] sm:$0xf]
          %v256 = vld [vmem:[%s254 + $0x4] sm:$0xf]
          %v257 = vld [vmem:[%s254 + $0x8] sm:$0x1]
          %v258 = vld [vmem:[%s254 + $0xc] sm:$0xf]
          %v259 = vld [vmem:[%s254 + $0x10] sm:$0xf]
          %v260 = vld [vmem:[%s254 + $0x14] sm:$0x1]
          %v261 = vld [vmem:[%s254 + $0x18] sm:$0xf]
          %v262 = vld [vmem:[%s254 + $0x1c] sm:$0xf]
          %v263 = vld [vmem:[%s254 + $0x20] sm:$0x1]
          %v264 = vld [vmem:[%s254 + $0x24] sm:$0xf]
          %v265 = vld [vmem:[%s254 + $0x28] sm:$0xf]
          %v266 = vld [vmem:[%s254 + $0x2c] sm:$0x1]
          %v267 = vld [vmem:[%s254 + $0x30] sm:$0xf]
          %v268 = vld [vmem:[%s254 + $0x34] sm:$0xf]
          %v269 = vld [vmem:[%s254 + $0x38] sm:$0x1]
          %v270 = vld [vmem:[%s254 + $0x3c] sm:$0xf]
          %v271 = vld [vmem:[%s254 + $0x40] sm:$0xf]
          %v272 = vld [vmem:[%s254 + $0x44] sm:$0x1]
          %v273 = vld [vmem:[%s254 + $0x48] sm:$0xf]
          %v274 = vld [vmem:[%s254 + $0x4c] sm:$0xf]
          %v275 = vld [vmem:[%s254 + $0x50] sm:$0x1]
          %v276 = vld [vmem:[%s254 + $0x54] sm:$0xf]
          %v277 = vld [vmem:[%s254 + $0x58] sm:$0xf]
          %v278 = vld [vmem:[%s254 + $0x5c] sm:$0x1]
          %v279 = vunpack.c.l.bf16 %v255
          %v280 = vunpack.c.l.bf16 %v256
          %v281 = vunpack.c.l.bf16 %v257
          %v282 = vunpack.c.l.bf16 %v258
          %v283 = vunpack.c.l.bf16 %v259
          %v284 = vunpack.c.l.bf16 %v260
          %v285 = vunpack.c.l.bf16 %v261
          %v286 = vunpack.c.l.bf16 %v262
          %v287 = vunpack.c.l.bf16 %v263
          %v288 = vunpack.c.l.bf16 %v264
          %v289 = vunpack.c.l.bf16 %v265
          %v290 = vunpack.c.l.bf16 %v266
          %v291 = vunpack.c.l.bf16 %v267
          %v292 = vunpack.c.l.bf16 %v268
          %v293 = vunpack.c.l.bf16 %v269
          %v294 = vunpack.c.l.bf16 %v270
          %v295 = vunpack.c.l.bf16 %v271
          %v296 = vunpack.c.l.bf16 %v272
          %v297 = vunpack.c.l.bf16 %v273
          %v298 = vunpack.c.l.bf16 %v274
          %v299 = vunpack.c.l.bf16 %v275
          %v300 = vunpack.c.l.bf16 %v276
          %v301 = vunpack.c.l.bf16 %v277
          %v302 = vunpack.c.l.bf16 %v278
          %v303 = vlaneseq
          %v304 = vshrl.u32 %v303, 7
          %v305 = vsub.s32 0, %v304
          %v306 = vrot.slane %v240, %v305
          %v307 = vmul.f32 %v279, %v306
          %v308 = vmul.f32 %v280, %v306
          %v309 = vmul.f32 %v282, %v306
          %v310 = vmul.f32 %v283, %v306
          %v311 = vmul.f32 %v285, %v306
          %v312 = vmul.f32 %v286, %v306
          %v313 = vmul.f32 %v288, %v306
          %v314 = vmul.f32 %v289, %v306
          %v315 = vmul.f32 %v291, %v306
          %v316 = vmul.f32 %v292, %v306
          %v317 = vmul.f32 %v294, %v306
          %v318 = vmul.f32 %v295, %v306
          %v319 = vmul.f32 %v297, %v306
          %v320 = vmul.f32 %v298, %v306
          %v321 = vmul.f32 %v300, %v306
          %v322 = vmul.f32 %v301, %v306
          %v323 = vadd.f32 %v307, 0.0
          %v324 = vadd.f32 %v308, 0.0
          %v325 = vadd.f32 %v309, 0.0
          %v326 = vadd.f32 %v310, 0.0
          %v327 = vadd.f32 %v311, 0.0
          %v328 = vadd.f32 %v312, 0.0
          %v329 = vadd.f32 %v313, 0.0
          %v330 = vadd.f32 %v314, 0.0
          %v331 = vadd.f32 %v315, 0.0
          %v332 = vadd.f32 %v316, 0.0
          %v333 = vadd.f32 %v317, 0.0
          %v334 = vadd.f32 %v318, 0.0
          %v335 = vadd.f32 %v319, 0.0
          %v336 = vadd.f32 %v320, 0.0
          %v337 = vadd.f32 %v321, 0.0
          %v338 = vadd.f32 %v322, 0.0
          %v339 = vlaneseq
          %v340 = vshrl.u32 %v339, 7
          %v341 = vsub.s32 1, %v340
          %v342 = vrot.slane %v240, %v341
          %v343 = vmul.f32 %v279, %v342
          %v344 = vmul.f32 %v280, %v342
          %v345 = vmul.f32 %v281, %v342
          %v346 = vmul.f32 %v282, %v342
          %v347 = vmul.f32 %v283, %v342
          %v348 = vmul.f32 %v284, %v342
          %v349 = vmul.f32 %v285, %v342
          %v350 = vmul.f32 %v286, %v342
          %v351 = vmul.f32 %v287, %v342
          %v352 = vmul.f32 %v288, %v342
          %v353 = vmul.f32 %v289, %v342
          %v354 = vmul.f32 %v290, %v342
          %v355 = vmul.f32 %v291, %v342
          %v356 = vmul.f32 %v292, %v342
          %v357 = vmul.f32 %v293, %v342
          %v358 = vmul.f32 %v294, %v342
          %v359 = vmul.f32 %v295, %v342
          %v360 = vmul.f32 %v296, %v342
          %v361 = vmul.f32 %v297, %v342
          %v362 = vmul.f32 %v298, %v342
          %v363 = vmul.f32 %v299, %v342
          %v364 = vmul.f32 %v300, %v342
          %v365 = vmul.f32 %v301, %v342
          %v366 = vmul.f32 %v302, %v342
          %vm391 = vcmask 1046528
          %v392 = vrot.slane %v343, 1
          %v393 = vrot.slane %v344, 1
          %v394 = vsel %vm391, %v392, %v393
          %v395 = vrot.slane %v345, 1
          %v396 = vsel %vm391, %v393, %v395
          %v397 = vrot.slane %v346, 1
          %v398 = vrot.slane %v347, 1
          %v399 = vsel %vm391, %v397, %v398
          %v400 = vrot.slane %v348, 1
          %v401 = vsel %vm391, %v398, %v400
          %v402 = vrot.slane %v349, 1
          %v403 = vrot.slane %v350, 1
          %v404 = vsel %vm391, %v402, %v403
          %v405 = vrot.slane %v351, 1
          %v406 = vsel %vm391, %v403, %v405
          %v407 = vrot.slane %v352, 1
          %v408 = vrot.slane %v353, 1
          %v409 = vsel %vm391, %v407, %v408
          %v410 = vrot.slane %v354, 1
          %v411 = vsel %vm391, %v408, %v410
          %v412 = vrot.slane %v355, 1
          %v413 = vrot.slane %v356, 1
          %v414 = vsel %vm391, %v412, %v413
          %v415 = vrot.slane %v357, 1
          %v416 = vsel %vm391, %v413, %v415
          %v417 = vrot.slane %v358, 1
          %v418 = vrot.slane %v359, 1
          %v419 = vsel %vm391, %v417, %v418
          %v420 = vrot.slane %v360, 1
          %v421 = vsel %vm391, %v418, %v420
          %v422 = vrot.slane %v361, 1
          %v423 = vrot.slane %v362, 1
          %v424 = vsel %vm391, %v422, %v423
          %v425 = vrot.slane %v363, 1
          %v426 = vsel %vm391, %v423, %v425
          %v427 = vrot.slane %v364, 1
          %v428 = vrot.slane %v365, 1
          %v429 = vsel %vm391, %v427, %v428
          %v430 = vrot.slane %v366, 1
          %v431 = vsel %vm391, %v428, %v430
          %v448 = vadd.f32 %v323, %v394
          %v449 = vadd.f32 %v324, %v396
          %v450 = vadd.f32 %v325, %v399
          %v451 = vadd.f32 %v326, %v401
          %v452 = vadd.f32 %v327, %v404
          %v453 = vadd.f32 %v328, %v406
          %v454 = vadd.f32 %v329, %v409
          %v455 = vadd.f32 %v330, %v411
          %v456 = vadd.f32 %v331, %v414
          %v457 = vadd.f32 %v332, %v416
          %v458 = vadd.f32 %v333, %v419
          %v459 = vadd.f32 %v334, %v421
          %v460 = vadd.f32 %v335, %v424
          %v461 = vadd.f32 %v336, %v426
          %v462 = vadd.f32 %v337, %v429
          %v463 = vadd.f32 %v338, %v431
          %v464 = vlaneseq
          %v465 = vshrl.u32 %v464, 7
          %v466 = vsub.s32 2, %v465
          %v467 = vrot.slane %v240, %v466
          %v468 = vmul.f32 %v279, %v467
          %v469 = vmul.f32 %v280, %v467
          %v470 = vmul.f32 %v281, %v467
          %v471 = vmul.f32 %v282, %v467
          %v472 = vmul.f32 %v283, %v467
          %v473 = vmul.f32 %v284, %v467
          %v474 = vmul.f32 %v285, %v467
          %v475 = vmul.f32 %v286, %v467
          %v476 = vmul.f32 %v287, %v467
          %v477 = vmul.f32 %v288, %v467
          %v478 = vmul.f32 %v289, %v467
          %v479 = vmul.f32 %v290, %v467
          %v480 = vmul.f32 %v291, %v467
          %v481 = vmul.f32 %v292, %v467
          %v482 = vmul.f32 %v293, %v467
          %v483 = vmul.f32 %v294, %v467
          %v484 = vmul.f32 %v295, %v467
          %v485 = vmul.f32 %v296, %v467
          %v486 = vmul.f32 %v297, %v467
          %v487 = vmul.f32 %v298, %v467
          %v488 = vmul.f32 %v299, %v467
          %v489 = vmul.f32 %v300, %v467
          %v490 = vmul.f32 %v301, %v467
          %v491 = vmul.f32 %v302, %v467
          %vm516 = vcmask 1045504
          %v517 = vrot.slane %v468, 2
          %v518 = vrot.slane %v469, 2
          %v519 = vsel %vm516, %v517, %v518
          %v520 = vrot.slane %v470, 2
          %v521 = vsel %vm516, %v518, %v520
          %v522 = vrot.slane %v471, 2
          %v523 = vrot.slane %v472, 2
          %v524 = vsel %vm516, %v522, %v523
          %v525 = vrot.slane %v473, 2
          %v526 = vsel %vm516, %v523, %v525
          %v527 = vrot.slane %v474, 2
          %v528 = vrot.slane %v475, 2
          %v529 = vsel %vm516, %v527, %v528
          %v530 = vrot.slane %v476, 2
          %v531 = vsel %vm516, %v528, %v530
          %v532 = vrot.slane %v477, 2
          %v533 = vrot.slane %v478, 2
          %v534 = vsel %vm516, %v532, %v533
          %v535 = vrot.slane %v479, 2
          %v536 = vsel %vm516, %v533, %v535
          %v537 = vrot.slane %v480, 2
          %v538 = vrot.slane %v481, 2
          %v539 = vsel %vm516, %v537, %v538
          %v540 = vrot.slane %v482, 2
          %v541 = vsel %vm516, %v538, %v540
          %v542 = vrot.slane %v483, 2
          %v543 = vrot.slane %v484, 2
          %v544 = vsel %vm516, %v542, %v543
          %v545 = vrot.slane %v485, 2
          %v546 = vsel %vm516, %v543, %v545
          %v547 = vrot.slane %v486, 2
          %v548 = vrot.slane %v487, 2
          %v549 = vsel %vm516, %v547, %v548
          %v550 = vrot.slane %v488, 2
          %v551 = vsel %vm516, %v548, %v550
          %v552 = vrot.slane %v489, 2
          %v553 = vrot.slane %v490, 2
          %v554 = vsel %vm516, %v552, %v553
          %v555 = vrot.slane %v491, 2
          %v556 = vsel %vm516, %v553, %v555
          %v573 = vadd.f32 %v448, %v519
          %v574 = vadd.f32 %v449, %v521
          %v575 = vadd.f32 %v450, %v524
          %v576 = vadd.f32 %v451, %v526
          %v577 = vadd.f32 %v452, %v529
          %v578 = vadd.f32 %v453, %v531
          %v579 = vadd.f32 %v454, %v534
          %v580 = vadd.f32 %v455, %v536
          %v581 = vadd.f32 %v456, %v539
          %v582 = vadd.f32 %v457, %v541
          %v583 = vadd.f32 %v458, %v544
          %v584 = vadd.f32 %v459, %v546
          %v585 = vadd.f32 %v460, %v549
          %v586 = vadd.f32 %v461, %v551
          %v587 = vadd.f32 %v462, %v554
          %v588 = vadd.f32 %v463, %v556
          %s589 = sadd.s32 %s251, 1
          %s590 = smul.u32 %s589, 3
          %s591 = smul.addr %s590, 4
          %s592 = scalar_lea.vmem %s236, %s591
          %v593 = vld [vmem:[%s592] sm:$0xf]
          %v594 = vld [vmem:[%s592 + $0x4] sm:$0xf]
          %v595 = vld [vmem:[%s592 + $0x8] sm:$0x1]
          %v596 = vld [vmem:[%s592 + $0xc] sm:$0xf]
          %v597 = vld [vmem:[%s592 + $0x10] sm:$0xf]
          %v598 = vld [vmem:[%s592 + $0x14] sm:$0x1]
          %v599 = vld [vmem:[%s592 + $0x18] sm:$0xf]
          %v600 = vld [vmem:[%s592 + $0x1c] sm:$0xf]
          %v601 = vld [vmem:[%s592 + $0x20] sm:$0x1]
          %v602 = vld [vmem:[%s592 + $0x24] sm:$0xf]
          %v603 = vld [vmem:[%s592 + $0x28] sm:$0xf]
          %v604 = vld [vmem:[%s592 + $0x2c] sm:$0x1]
          %v605 = vld [vmem:[%s592 + $0x30] sm:$0xf]
          %v606 = vld [vmem:[%s592 + $0x34] sm:$0xf]
          %v607 = vld [vmem:[%s592 + $0x38] sm:$0x1]
          %v608 = vld [vmem:[%s592 + $0x3c] sm:$0xf]
          %v609 = vld [vmem:[%s592 + $0x40] sm:$0xf]
          %v610 = vld [vmem:[%s592 + $0x44] sm:$0x1]
          %v611 = vld [vmem:[%s592 + $0x48] sm:$0xf]
          %v612 = vld [vmem:[%s592 + $0x4c] sm:$0xf]
          %v613 = vld [vmem:[%s592 + $0x50] sm:$0x1]
          %v614 = vld [vmem:[%s592 + $0x54] sm:$0xf]
          %v615 = vld [vmem:[%s592 + $0x58] sm:$0xf]
          %v616 = vld [vmem:[%s592 + $0x5c] sm:$0x1]
          %v617 = vunpack.c.l.bf16 %v593
          %v618 = vunpack.c.l.bf16 %v594
          %v619 = vunpack.c.l.bf16 %v595
          %v620 = vunpack.c.l.bf16 %v596
          %v621 = vunpack.c.l.bf16 %v597
          %v622 = vunpack.c.l.bf16 %v598
          %v623 = vunpack.c.l.bf16 %v599
          %v624 = vunpack.c.l.bf16 %v600
          %v625 = vunpack.c.l.bf16 %v601
          %v626 = vunpack.c.l.bf16 %v602
          %v627 = vunpack.c.l.bf16 %v603
          %v628 = vunpack.c.l.bf16 %v604
          %v629 = vunpack.c.l.bf16 %v605
          %v630 = vunpack.c.l.bf16 %v606
          %v631 = vunpack.c.l.bf16 %v607
          %v632 = vunpack.c.l.bf16 %v608
          %v633 = vunpack.c.l.bf16 %v609
          %v634 = vunpack.c.l.bf16 %v610
          %v635 = vunpack.c.l.bf16 %v611
          %v636 = vunpack.c.l.bf16 %v612
          %v637 = vunpack.c.l.bf16 %v613
          %v638 = vunpack.c.l.bf16 %v614
          %v639 = vunpack.c.l.bf16 %v615
          %v640 = vunpack.c.l.bf16 %v616
          %v641 = vlaneseq
          %v642 = vshrl.u32 %v641, 7
          %v643 = vsub.s32 0, %v642
          %v644 = vrot.slane %v241, %v643
          %v645 = vmul.f32 %v617, %v644
          %v646 = vmul.f32 %v618, %v644
          %v647 = vmul.f32 %v620, %v644
          %v648 = vmul.f32 %v621, %v644
          %v649 = vmul.f32 %v623, %v644
          %v650 = vmul.f32 %v624, %v644
          %v651 = vmul.f32 %v626, %v644
          %v652 = vmul.f32 %v627, %v644
          %v653 = vmul.f32 %v629, %v644
          %v654 = vmul.f32 %v630, %v644
          %v655 = vmul.f32 %v632, %v644
          %v656 = vmul.f32 %v633, %v644
          %v657 = vmul.f32 %v635, %v644
          %v658 = vmul.f32 %v636, %v644
          %v659 = vmul.f32 %v638, %v644
          %v660 = vmul.f32 %v639, %v644
          %v661 = vadd.f32 %v573, %v645
          %v662 = vadd.f32 %v574, %v646
          %v663 = vadd.f32 %v575, %v647
          %v664 = vadd.f32 %v576, %v648
          %v665 = vadd.f32 %v577, %v649
          %v666 = vadd.f32 %v578, %v650
          %v667 = vadd.f32 %v579, %v651
          %v668 = vadd.f32 %v580, %v652
          %v669 = vadd.f32 %v581, %v653
          %v670 = vadd.f32 %v582, %v654
          %v671 = vadd.f32 %v583, %v655
          %v672 = vadd.f32 %v584, %v656
          %v673 = vadd.f32 %v585, %v657
          %v674 = vadd.f32 %v586, %v658
          %v675 = vadd.f32 %v587, %v659
          %v676 = vadd.f32 %v588, %v660
          %v677 = vlaneseq
          %v678 = vshrl.u32 %v677, 7
          %v679 = vsub.s32 1, %v678
          %v680 = vrot.slane %v241, %v679
          %v681 = vmul.f32 %v617, %v680
          %v682 = vmul.f32 %v618, %v680
          %v683 = vmul.f32 %v619, %v680
          %v684 = vmul.f32 %v620, %v680
          %v685 = vmul.f32 %v621, %v680
          %v686 = vmul.f32 %v622, %v680
          %v687 = vmul.f32 %v623, %v680
          %v688 = vmul.f32 %v624, %v680
          %v689 = vmul.f32 %v625, %v680
          %v690 = vmul.f32 %v626, %v680
          %v691 = vmul.f32 %v627, %v680
          %v692 = vmul.f32 %v628, %v680
          %v693 = vmul.f32 %v629, %v680
          %v694 = vmul.f32 %v630, %v680
          %v695 = vmul.f32 %v631, %v680
          %v696 = vmul.f32 %v632, %v680
          %v697 = vmul.f32 %v633, %v680
          %v698 = vmul.f32 %v634, %v680
          %v699 = vmul.f32 %v635, %v680
          %v700 = vmul.f32 %v636, %v680
          %v701 = vmul.f32 %v637, %v680
          %v702 = vmul.f32 %v638, %v680
          %v703 = vmul.f32 %v639, %v680
          %v704 = vmul.f32 %v640, %v680
          %v729 = vrot.slane %v681, 1
          %v730 = vrot.slane %v682, 1
          %v731 = vsel %vm391, %v729, %v730
          %v732 = vrot.slane %v683, 1
          %v733 = vsel %vm391, %v730, %v732
          %v734 = vrot.slane %v684, 1
          %v735 = vrot.slane %v685, 1
          %v736 = vsel %vm391, %v734, %v735
          %v737 = vrot.slane %v686, 1
          %v738 = vsel %vm391, %v735, %v737
          %v739 = vrot.slane %v687, 1
          %v740 = vrot.slane %v688, 1
          %v741 = vsel %vm391, %v739, %v740
          %v742 = vrot.slane %v689, 1
          %v743 = vsel %vm391, %v740, %v742
          %v744 = vrot.slane %v690, 1
          %v745 = vrot.slane %v691, 1
          %v746 = vsel %vm391, %v744, %v745
          %v747 = vrot.slane %v692, 1
          %v748 = vsel %vm391, %v745, %v747
          %v749 = vrot.slane %v693, 1
          %v750 = vrot.slane %v694, 1
          %v751 = vsel %vm391, %v749, %v750
          %v752 = vrot.slane %v695, 1
          %v753 = vsel %vm391, %v750, %v752
          %v754 = vrot.slane %v696, 1
          %v755 = vrot.slane %v697, 1
          %v756 = vsel %vm391, %v754, %v755
          %v757 = vrot.slane %v698, 1
          %v758 = vsel %vm391, %v755, %v757
          %v759 = vrot.slane %v699, 1
          %v760 = vrot.slane %v700, 1
          %v761 = vsel %vm391, %v759, %v760
          %v762 = vrot.slane %v701, 1
          %v763 = vsel %vm391, %v760, %v762
          %v764 = vrot.slane %v702, 1
          %v765 = vrot.slane %v703, 1
          %v766 = vsel %vm391, %v764, %v765
          %v767 = vrot.slane %v704, 1
          %v768 = vsel %vm391, %v765, %v767
          %v785 = vadd.f32 %v661, %v731
          %v786 = vadd.f32 %v662, %v733
          %v787 = vadd.f32 %v663, %v736
          %v788 = vadd.f32 %v664, %v738
          %v789 = vadd.f32 %v665, %v741
          %v790 = vadd.f32 %v666, %v743
          %v791 = vadd.f32 %v667, %v746
          %v792 = vadd.f32 %v668, %v748
          %v793 = vadd.f32 %v669, %v751
          %v794 = vadd.f32 %v670, %v753
          %v795 = vadd.f32 %v671, %v756
          %v796 = vadd.f32 %v672, %v758
          %v797 = vadd.f32 %v673, %v761
          %v798 = vadd.f32 %v674, %v763
          %v799 = vadd.f32 %v675, %v766
          %v800 = vadd.f32 %v676, %v768
          %v801 = vlaneseq
          %v802 = vshrl.u32 %v801, 7
          %v803 = vsub.s32 2, %v802
          %v804 = vrot.slane %v241, %v803
          %v805 = vmul.f32 %v617, %v804
          %v806 = vmul.f32 %v618, %v804
          %v807 = vmul.f32 %v619, %v804
          %v808 = vmul.f32 %v620, %v804
          %v809 = vmul.f32 %v621, %v804
          %v810 = vmul.f32 %v622, %v804
          %v811 = vmul.f32 %v623, %v804
          %v812 = vmul.f32 %v624, %v804
          %v813 = vmul.f32 %v625, %v804
          %v814 = vmul.f32 %v626, %v804
          %v815 = vmul.f32 %v627, %v804
          %v816 = vmul.f32 %v628, %v804
          %v817 = vmul.f32 %v629, %v804
          %v818 = vmul.f32 %v630, %v804
          %v819 = vmul.f32 %v631, %v804
          %v820 = vmul.f32 %v632, %v804
          %v821 = vmul.f32 %v633, %v804
          %v822 = vmul.f32 %v634, %v804
          %v823 = vmul.f32 %v635, %v804
          %v824 = vmul.f32 %v636, %v804
          %v825 = vmul.f32 %v637, %v804
          %v826 = vmul.f32 %v638, %v804
          %v827 = vmul.f32 %v639, %v804
          %v828 = vmul.f32 %v640, %v804
          %v853 = vrot.slane %v805, 2
          %v854 = vrot.slane %v806, 2
          %v855 = vsel %vm516, %v853, %v854
          %v856 = vrot.slane %v807, 2
          %v857 = vsel %vm516, %v854, %v856
          %v858 = vrot.slane %v808, 2
          %v859 = vrot.slane %v809, 2
          %v860 = vsel %vm516, %v858, %v859
          %v861 = vrot.slane %v810, 2
          %v862 = vsel %vm516, %v859, %v861
          %v863 = vrot.slane %v811, 2
          %v864 = vrot.slane %v812, 2
          %v865 = vsel %vm516, %v863, %v864
          %v866 = vrot.slane %v813, 2
          %v867 = vsel %vm516, %v864, %v866
          %v868 = vrot.slane %v814, 2
          %v869 = vrot.slane %v815, 2
          %v870 = vsel %vm516, %v868, %v869
          %v871 = vrot.slane %v816, 2
          %v872 = vsel %vm516, %v869, %v871
          %v873 = vrot.slane %v817, 2
          %v874 = vrot.slane %v818, 2
          %v875 = vsel %vm516, %v873, %v874
          %v876 = vrot.slane %v819, 2
          %v877 = vsel %vm516, %v874, %v876
          %v878 = vrot.slane %v820, 2
          %v879 = vrot.slane %v821, 2
          %v880 = vsel %vm516, %v878, %v879
          %v881 = vrot.slane %v822, 2
          %v882 = vsel %vm516, %v879, %v881
          %v883 = vrot.slane %v823, 2
          %v884 = vrot.slane %v824, 2
          %v885 = vsel %vm516, %v883, %v884
          %v886 = vrot.slane %v825, 2
          %v887 = vsel %vm516, %v884, %v886
          %v888 = vrot.slane %v826, 2
          %v889 = vrot.slane %v827, 2
          %v890 = vsel %vm516, %v888, %v889
          %v891 = vrot.slane %v828, 2
          %v892 = vsel %vm516, %v889, %v891
          %v909 = vadd.f32 %v785, %v855
          %v910 = vadd.f32 %v786, %v857
          %v911 = vadd.f32 %v787, %v860
          %v912 = vadd.f32 %v788, %v862
          %v913 = vadd.f32 %v789, %v865
          %v914 = vadd.f32 %v790, %v867
          %v915 = vadd.f32 %v791, %v870
          %v916 = vadd.f32 %v792, %v872
          %v917 = vadd.f32 %v793, %v875
          %v918 = vadd.f32 %v794, %v877
          %v919 = vadd.f32 %v795, %v880
          %v920 = vadd.f32 %v796, %v882
          %v921 = vadd.f32 %v797, %v885
          %v922 = vadd.f32 %v798, %v887
          %v923 = vadd.f32 %v799, %v890
          %v924 = vadd.f32 %v800, %v892
          %s925 = sadd.s32 %s251, 2
          %s926 = smul.u32 %s925, 3
          %s927 = smul.addr %s926, 4
          %s928 = scalar_lea.vmem %s236, %s927
          %v929 = vld [vmem:[%s928] sm:$0xf]
          %v930 = vld [vmem:[%s928 + $0x4] sm:$0xf]
          %v931 = vld [vmem:[%s928 + $0x8] sm:$0x1]
          %v932 = vld [vmem:[%s928 + $0xc] sm:$0xf]
          %v933 = vld [vmem:[%s928 + $0x10] sm:$0xf]
          %v934 = vld [vmem:[%s928 + $0x14] sm:$0x1]
          %v935 = vld [vmem:[%s928 + $0x18] sm:$0xf]
          %v936 = vld [vmem:[%s928 + $0x1c] sm:$0xf]
          %v937 = vld [vmem:[%s928 + $0x20] sm:$0x1]
          %v938 = vld [vmem:[%s928 + $0x24] sm:$0xf]
          %v939 = vld [vmem:[%s928 + $0x28] sm:$0xf]
          %v940 = vld [vmem:[%s928 + $0x2c] sm:$0x1]
          %v941 = vld [vmem:[%s928 + $0x30] sm:$0xf]
          %v942 = vld [vmem:[%s928 + $0x34] sm:$0xf]
          %v943 = vld [vmem:[%s928 + $0x38] sm:$0x1]
          %v944 = vld [vmem:[%s928 + $0x3c] sm:$0xf]
          %v945 = vld [vmem:[%s928 + $0x40] sm:$0xf]
          %v946 = vld [vmem:[%s928 + $0x44] sm:$0x1]
          %v947 = vld [vmem:[%s928 + $0x48] sm:$0xf]
          %v948 = vld [vmem:[%s928 + $0x4c] sm:$0xf]
          %v949 = vld [vmem:[%s928 + $0x50] sm:$0x1]
          %v950 = vld [vmem:[%s928 + $0x54] sm:$0xf]
          %v951 = vld [vmem:[%s928 + $0x58] sm:$0xf]
          %v952 = vld [vmem:[%s928 + $0x5c] sm:$0x1]
          %v953 = vunpack.c.l.bf16 %v929
          %v954 = vunpack.c.l.bf16 %v930
          %v955 = vunpack.c.l.bf16 %v931
          %v956 = vunpack.c.l.bf16 %v932
          %v957 = vunpack.c.l.bf16 %v933
          %v958 = vunpack.c.l.bf16 %v934
          %v959 = vunpack.c.l.bf16 %v935
          %v960 = vunpack.c.l.bf16 %v936
          %v961 = vunpack.c.l.bf16 %v937
          %v962 = vunpack.c.l.bf16 %v938
          %v963 = vunpack.c.l.bf16 %v939
          %v964 = vunpack.c.l.bf16 %v940
          %v965 = vunpack.c.l.bf16 %v941
          %v966 = vunpack.c.l.bf16 %v942
          %v967 = vunpack.c.l.bf16 %v943
          %v968 = vunpack.c.l.bf16 %v944
          %v969 = vunpack.c.l.bf16 %v945
          %v970 = vunpack.c.l.bf16 %v946
          %v971 = vunpack.c.l.bf16 %v947
          %v972 = vunpack.c.l.bf16 %v948
          %v973 = vunpack.c.l.bf16 %v949
          %v974 = vunpack.c.l.bf16 %v950
          %v975 = vunpack.c.l.bf16 %v951
          %v976 = vunpack.c.l.bf16 %v952
          %v977 = vlaneseq
          %v978 = vshrl.u32 %v977, 7
          %v979 = vsub.s32 0, %v978
          %v980 = vrot.slane %v242, %v979
          %v981 = vmul.f32 %v953, %v980
          %v982 = vmul.f32 %v954, %v980
          %v983 = vmul.f32 %v956, %v980
          %v984 = vmul.f32 %v957, %v980
          %v985 = vmul.f32 %v959, %v980
          %v986 = vmul.f32 %v960, %v980
          %v987 = vmul.f32 %v962, %v980
          %v988 = vmul.f32 %v963, %v980
          %v989 = vmul.f32 %v965, %v980
          %v990 = vmul.f32 %v966, %v980
          %v991 = vmul.f32 %v968, %v980
          %v992 = vmul.f32 %v969, %v980
          %v993 = vmul.f32 %v971, %v980
          %v994 = vmul.f32 %v972, %v980
          %v995 = vmul.f32 %v974, %v980
          %v996 = vmul.f32 %v975, %v980
          %v997 = vadd.f32 %v909, %v981
          %v998 = vadd.f32 %v910, %v982
          %v999 = vadd.f32 %v911, %v983
          %v1000 = vadd.f32 %v912, %v984
          %v1001 = vadd.f32 %v913, %v985
          %v1002 = vadd.f32 %v914, %v986
          %v1003 = vadd.f32 %v915, %v987
          %v1004 = vadd.f32 %v916, %v988
          %v1005 = vadd.f32 %v917, %v989
          %v1006 = vadd.f32 %v918, %v990
          %v1007 = vadd.f32 %v919, %v991
          %v1008 = vadd.f32 %v920, %v992
          %v1009 = vadd.f32 %v921, %v993
          %v1010 = vadd.f32 %v922, %v994
          %v1011 = vadd.f32 %v923, %v995
          %v1012 = vadd.f32 %v924, %v996
          %v1013 = vlaneseq
          %v1014 = vshrl.u32 %v1013, 7
          %v1015 = vsub.s32 1, %v1014
          %v1016 = vrot.slane %v242, %v1015
          %v1017 = vmul.f32 %v953, %v1016
          %v1018 = vmul.f32 %v954, %v1016
          %v1019 = vmul.f32 %v955, %v1016
          %v1020 = vmul.f32 %v956, %v1016
          %v1021 = vmul.f32 %v957, %v1016
          %v1022 = vmul.f32 %v958, %v1016
          %v1023 = vmul.f32 %v959, %v1016
          %v1024 = vmul.f32 %v960, %v1016
          %v1025 = vmul.f32 %v961, %v1016
          %v1026 = vmul.f32 %v962, %v1016
          %v1027 = vmul.f32 %v963, %v1016
          %v1028 = vmul.f32 %v964, %v1016
          %v1029 = vmul.f32 %v965, %v1016
          %v1030 = vmul.f32 %v966, %v1016
          %v1031 = vmul.f32 %v967, %v1016
          %v1032 = vmul.f32 %v968, %v1016
          %v1033 = vmul.f32 %v969, %v1016
          %v1034 = vmul.f32 %v970, %v1016
          %v1035 = vmul.f32 %v971, %v1016
          %v1036 = vmul.f32 %v972, %v1016
          %v1037 = vmul.f32 %v973, %v1016
          %v1038 = vmul.f32 %v974, %v1016
          %v1039 = vmul.f32 %v975, %v1016
          %v1040 = vmul.f32 %v976, %v1016
          %v1065 = vrot.slane %v1017, 1
          %v1066 = vrot.slane %v1018, 1
          %v1067 = vsel %vm391, %v1065, %v1066
          %v1068 = vrot.slane %v1019, 1
          %v1069 = vsel %vm391, %v1066, %v1068
          %v1070 = vrot.slane %v1020, 1
          %v1071 = vrot.slane %v1021, 1
          %v1072 = vsel %vm391, %v1070, %v1071
          %v1073 = vrot.slane %v1022, 1
          %v1074 = vsel %vm391, %v1071, %v1073
          %v1075 = vrot.slane %v1023, 1
          %v1076 = vrot.slane %v1024, 1
          %v1077 = vsel %vm391, %v1075, %v1076
          %v1078 = vrot.slane %v1025, 1
          %v1079 = vsel %vm391, %v1076, %v1078
          %v1080 = vrot.slane %v1026, 1
          %v1081 = vrot.slane %v1027, 1
          %v1082 = vsel %vm391, %v1080, %v1081
          %v1083 = vrot.slane %v1028, 1
          %v1084 = vsel %vm391, %v1081, %v1083
          %v1085 = vrot.slane %v1029, 1
          %v1086 = vrot.slane %v1030, 1
          %v1087 = vsel %vm391, %v1085, %v1086
          %v1088 = vrot.slane %v1031, 1
          %v1089 = vsel %vm391, %v1086, %v1088
          %v1090 = vrot.slane %v1032, 1
          %v1091 = vrot.slane %v1033, 1
          %v1092 = vsel %vm391, %v1090, %v1091
          %v1093 = vrot.slane %v1034, 1
          %v1094 = vsel %vm391, %v1091, %v1093
          %v1095 = vrot.slane %v1035, 1
          %v1096 = vrot.slane %v1036, 1
          %v1097 = vsel %vm391, %v1095, %v1096
          %v1098 = vrot.slane %v1037, 1
          %v1099 = vsel %vm391, %v1096, %v1098
          %v1100 = vrot.slane %v1038, 1
          %v1101 = vrot.slane %v1039, 1
          %v1102 = vsel %vm391, %v1100, %v1101
          %v1103 = vrot.slane %v1040, 1
          %v1104 = vsel %vm391, %v1101, %v1103
          %v1121 = vadd.f32 %v997, %v1067
          %v1122 = vadd.f32 %v998, %v1069
          %v1123 = vadd.f32 %v999, %v1072
          %v1124 = vadd.f32 %v1000, %v1074
          %v1125 = vadd.f32 %v1001, %v1077
          %v1126 = vadd.f32 %v1002, %v1079
          %v1127 = vadd.f32 %v1003, %v1082
          %v1128 = vadd.f32 %v1004, %v1084
          %v1129 = vadd.f32 %v1005, %v1087
          %v1130 = vadd.f32 %v1006, %v1089
          %v1131 = vadd.f32 %v1007, %v1092
          %v1132 = vadd.f32 %v1008, %v1094
          %v1133 = vadd.f32 %v1009, %v1097
          %v1134 = vadd.f32 %v1010, %v1099
          %v1135 = vadd.f32 %v1011, %v1102
          %v1136 = vadd.f32 %v1012, %v1104
          %v1137 = vlaneseq
          %v1138 = vshrl.u32 %v1137, 7
          %v1139 = vsub.s32 2, %v1138
          %v1140 = vrot.slane %v242, %v1139
          %v1141 = vmul.f32 %v953, %v1140
          %v1142 = vmul.f32 %v954, %v1140
          %v1143 = vmul.f32 %v955, %v1140
          %v1144 = vmul.f32 %v956, %v1140
          %v1145 = vmul.f32 %v957, %v1140
          %v1146 = vmul.f32 %v958, %v1140
          %v1147 = vmul.f32 %v959, %v1140
          %v1148 = vmul.f32 %v960, %v1140
          %v1149 = vmul.f32 %v961, %v1140
          %v1150 = vmul.f32 %v962, %v1140
          %v1151 = vmul.f32 %v963, %v1140
          %v1152 = vmul.f32 %v964, %v1140
          %v1153 = vmul.f32 %v965, %v1140
          %v1154 = vmul.f32 %v966, %v1140
          %v1155 = vmul.f32 %v967, %v1140
          %v1156 = vmul.f32 %v968, %v1140
          %v1157 = vmul.f32 %v969, %v1140
          %v1158 = vmul.f32 %v970, %v1140
          %v1159 = vmul.f32 %v971, %v1140
          %v1160 = vmul.f32 %v972, %v1140
          %v1161 = vmul.f32 %v973, %v1140
          %v1162 = vmul.f32 %v974, %v1140
          %v1163 = vmul.f32 %v975, %v1140
          %v1164 = vmul.f32 %v976, %v1140
          %v1189 = vrot.slane %v1141, 2
          %v1190 = vrot.slane %v1142, 2
          %v1191 = vsel %vm516, %v1189, %v1190
          %v1192 = vrot.slane %v1143, 2
          %v1193 = vsel %vm516, %v1190, %v1192
          %v1194 = vrot.slane %v1144, 2
          %v1195 = vrot.slane %v1145, 2
          %v1196 = vsel %vm516, %v1194, %v1195
          %v1197 = vrot.slane %v1146, 2
          %v1198 = vsel %vm516, %v1195, %v1197
          %v1199 = vrot.slane %v1147, 2
          %v1200 = vrot.slane %v1148, 2
          %v1201 = vsel %vm516, %v1199, %v1200
          %v1202 = vrot.slane %v1149, 2
          %v1203 = vsel %vm516, %v1200, %v1202
          %v1204 = vrot.slane %v1150, 2
          %v1205 = vrot.slane %v1151, 2
          %v1206 = vsel %vm516, %v1204, %v1205
          %v1207 = vrot.slane %v1152, 2
          %v1208 = vsel %vm516, %v1205, %v1207
          %v1209 = vrot.slane %v1153, 2
          %v1210 = vrot.slane %v1154, 2
          %v1211 = vsel %vm516, %v1209, %v1210
          %v1212 = vrot.slane %v1155, 2
          %v1213 = vsel %vm516, %v1210, %v1212
          %v1214 = vrot.slane %v1156, 2
          %v1215 = vrot.slane %v1157, 2
          %v1216 = vsel %vm516, %v1214, %v1215
          %v1217 = vrot.slane %v1158, 2
          %v1218 = vsel %vm516, %v1215, %v1217
          %v1219 = vrot.slane %v1159, 2
          %v1220 = vrot.slane %v1160, 2
          %v1221 = vsel %vm516, %v1219, %v1220
          %v1222 = vrot.slane %v1161, 2
          %v1223 = vsel %vm516, %v1220, %v1222
          %v1224 = vrot.slane %v1162, 2
          %v1225 = vrot.slane %v1163, 2
          %v1226 = vsel %vm516, %v1224, %v1225
          %v1227 = vrot.slane %v1164, 2
          %v1228 = vsel %vm516, %v1225, %v1227
          %v1245 = vadd.f32 %v1121, %v1191
          %v1246 = vadd.f32 %v1122, %v1193
          %v1247 = vadd.f32 %v1123, %v1196
          %v1248 = vadd.f32 %v1124, %v1198
          %v1249 = vadd.f32 %v1125, %v1201
          %v1250 = vadd.f32 %v1126, %v1203
          %v1251 = vadd.f32 %v1127, %v1206
          %v1252 = vadd.f32 %v1128, %v1208
          %v1253 = vadd.f32 %v1129, %v1211
          %v1254 = vadd.f32 %v1130, %v1213
          %v1255 = vadd.f32 %v1131, %v1216
          %v1256 = vadd.f32 %v1132, %v1218
          %v1257 = vadd.f32 %v1133, %v1221
          %v1258 = vadd.f32 %v1134, %v1223
          %v1259 = vadd.f32 %v1135, %v1226
          %v1260 = vadd.f32 %v1136, %v1228
          %v1262 = vlaneseq
          %v1263 = vshrl.u32 %v1262, 7
          %v1264 = vsub.s32 0, %v1263
          %v1265 = vrot.slane %v243, %v1264
          %v1267 = vadd.f32 %v1245, %v1265
          %v1268 = vadd.f32 %v1246, %v1265
          %v1269 = vadd.f32 %v1247, %v1265
          %v1270 = vadd.f32 %v1248, %v1265
          %v1271 = vadd.f32 %v1249, %v1265
          %v1272 = vadd.f32 %v1250, %v1265
          %v1273 = vadd.f32 %v1251, %v1265
          %v1274 = vadd.f32 %v1252, %v1265
          %v1275 = vadd.f32 %v1253, %v1265
          %v1276 = vadd.f32 %v1254, %v1265
          %v1277 = vadd.f32 %v1255, %v1265
          %v1278 = vadd.f32 %v1256, %v1265
          %v1279 = vadd.f32 %v1257, %v1265
          %v1280 = vadd.f32 %v1258, %v1265
          %v1281 = vadd.f32 %v1259, %v1265
          %v1282 = vadd.f32 %v1260, %v1265
          %v1283 = vmax.f32 %v1267, 0.0
          %v1284 = vmax.f32 %v1268, 0.0
          %v1285 = vmax.f32 %v1269, 0.0
          %v1286 = vmax.f32 %v1270, 0.0
          %v1287 = vmax.f32 %v1271, 0.0
          %v1288 = vmax.f32 %v1272, 0.0
          %v1289 = vmax.f32 %v1273, 0.0
          %v1290 = vmax.f32 %v1274, 0.0
          %v1291 = vmax.f32 %v1275, 0.0
          %v1292 = vmax.f32 %v1276, 0.0
          %v1293 = vmax.f32 %v1277, 0.0
          %v1294 = vmax.f32 %v1278, 0.0
          %v1295 = vmax.f32 %v1279, 0.0
          %v1296 = vmax.f32 %v1280, 0.0
          %v1297 = vmax.f32 %v1281, 0.0
          %v1298 = vmax.f32 %v1282, 0.0
          %v1299 = vmin.f32 %v1283, 6.0
          %v1300 = vmin.f32 %v1284, 6.0
          %v1301 = vmin.f32 %v1285, 6.0
          %v1302 = vmin.f32 %v1286, 6.0
          %v1303 = vmin.f32 %v1287, 6.0
          %v1304 = vmin.f32 %v1288, 6.0
          %v1305 = vmin.f32 %v1289, 6.0
          %v1306 = vmin.f32 %v1290, 6.0
          %v1307 = vmin.f32 %v1291, 6.0
          %v1308 = vmin.f32 %v1292, 6.0
          %v1309 = vmin.f32 %v1293, 6.0
          %v1310 = vmin.f32 %v1294, 6.0
          %v1311 = vmin.f32 %v1295, 6.0
          %v1312 = vmin.f32 %v1296, 6.0
          %v1313 = vmin.f32 %v1297, 6.0
          %v1314 = vmin.f32 %v1298, 6.0
          %v1315 = vpack.c.bf16 %v1300, %v1299
          %v1316 = vpack.c.bf16 %v1302, %v1301
          %v1317 = vpack.c.bf16 %v1304, %v1303
          %v1318 = vpack.c.bf16 %v1306, %v1305
          %v1319 = vpack.c.bf16 %v1308, %v1307
          %v1320 = vpack.c.bf16 %v1310, %v1309
          %v1321 = vpack.c.bf16 %v1312, %v1311
          %v1322 = vpack.c.bf16 %v1314, %v1313
          %v1331 = vunpack.c.l.b16 %v1315
          %v1332 = vunpack.c.h.b16 %v1315
          %v1333 = vunpack.c.l.b16 %v1316
          %v1334 = vunpack.c.h.b16 %v1316
          %v1335 = vunpack.c.l.b16 %v1317
          %v1336 = vunpack.c.h.b16 %v1317
          %v1337 = vunpack.c.l.b16 %v1318
          %v1338 = vunpack.c.h.b16 %v1318
          %v1339 = vunpack.c.l.b16 %v1319
          %v1340 = vunpack.c.h.b16 %v1319
          %v1341 = vunpack.c.l.b16 %v1320
          %v1342 = vunpack.c.h.b16 %v1320
          %v1343 = vunpack.c.l.b16 %v1321
          %v1344 = vunpack.c.h.b16 %v1321
          %v1345 = vunpack.c.l.b16 %v1322
          %v1346 = vunpack.c.h.b16 %v1322
          %v1347 = vpack.c.b16 %v1331, %v1331
          %v1348 = vpack.c.b16 %v1332, %v1332
          %v1349 = vpack.c.b16 %v1333, %v1333
          %v1350 = vpack.c.b16 %v1334, %v1334
          %v1351 = vpack.c.b16 %v1335, %v1335
          %v1352 = vpack.c.b16 %v1336, %v1336
          %v1353 = vpack.c.b16 %v1337, %v1337
          %v1354 = vpack.c.b16 %v1338, %v1338
          %v1355 = vpack.c.b16 %v1339, %v1339
          %v1356 = vpack.c.b16 %v1340, %v1340
          %v1357 = vpack.c.b16 %v1341, %v1341
          %v1358 = vpack.c.b16 %v1342, %v1342
          %v1359 = vpack.c.b16 %v1343, %v1343
          %v1360 = vpack.c.b16 %v1344, %v1344
          %v1361 = vpack.c.b16 %v1345, %v1345
          %v1362 = vpack.c.b16 %v1346, %v1346
          %s1379 = smul.u32 %s250, 2
          %s1380 = smul.addr %s1379, 4
          %s1381 = scalar_lea.vmem [#allocation2], %s1380
          %1382 = vst [vmem:[%s1381] sm:$0xf] %v1347
          %1383 = vst [vmem:[%s1381 + $0x4] sm:$0xf] %v1348
          %1384 = vst [vmem:[%s1381 + $0x8] sm:$0xf] %v1349
          %1385 = vst [vmem:[%s1381 + $0xc] sm:$0xf] %v1350
          %1386 = vst [vmem:[%s1381 + $0x10] sm:$0xf] %v1351
          %1387 = vst [vmem:[%s1381 + $0x14] sm:$0xf] %v1352
          %1388 = vst [vmem:[%s1381 + $0x18] sm:$0xf] %v1353
          %1389 = vst [vmem:[%s1381 + $0x1c] sm:$0xf] %v1354
          %1390 = vst [vmem:[%s1381 + $0x20] sm:$0xf] %v1355
          %1391 = vst [vmem:[%s1381 + $0x24] sm:$0xf] %v1356
          %1392 = vst [vmem:[%s1381 + $0x28] sm:$0xf] %v1357
          %1393 = vst [vmem:[%s1381 + $0x2c] sm:$0xf] %v1358
          %1394 = vst [vmem:[%s1381 + $0x30] sm:$0xf] %v1359
          %1395 = vst [vmem:[%s1381 + $0x34] sm:$0xf] %v1360
          %1396 = vst [vmem:[%s1381 + $0x38] sm:$0xf] %v1361
          %1397 = vst [vmem:[%s1381 + $0x3c] sm:$0xf] %v1362
        $region45: #{tpu_custom_call.1} parent=39 // loop_footer
          %s249 = sadd.s32 1, %s245
        $region46: #{tpu_custom_call.1} parent=39 // loop_footer_branch
          %244 = sbr.rel target = $region42
        $region47: #{tpu_custom_call.1} parent=39 // loop_exit
          _
        %v1398 = vld [vmem:[#allocation2] sm:$0xf]
        %v1399 = vld [vmem:[#allocation2 + $0x4] sm:$0xf]
        %v1400 = vld [vmem:[#allocation2 + $0x8] sm:$0xf]
        %v1401 = vld [vmem:[#allocation2 + $0xc] sm:$0xf]
        %v1402 = vld [vmem:[#allocation2 + $0x10] sm:$0xf]
        %v1403 = vld [vmem:[#allocation2 + $0x14] sm:$0xf]
        %v1404 = vld [vmem:[#allocation2 + $0x18] sm:$0xf]
        %v1405 = vld [vmem:[#allocation2 + $0x1c] sm:$0xf]
        %v1406 = vld [vmem:[#allocation2 + $0x20] sm:$0xf]
        %v1407 = vld [vmem:[#allocation2 + $0x24] sm:$0xf]
        %v1408 = vld [vmem:[#allocation2 + $0x28] sm:$0xf]
        %v1409 = vld [vmem:[#allocation2 + $0x2c] sm:$0xf]
        %v1410 = vld [vmem:[#allocation2 + $0x30] sm:$0xf]
        %v1411 = vld [vmem:[#allocation2 + $0x34] sm:$0xf]
        %v1412 = vld [vmem:[#allocation2 + $0x38] sm:$0xf]
        %v1413 = vld [vmem:[#allocation2 + $0x3c] sm:$0xf]
        %v1414 = vld [vmem:[#allocation2 + $0x40] sm:$0xf]
        %v1415 = vld [vmem:[#allocation2 + $0x44] sm:$0xf]
        %v1416 = vld [vmem:[#allocation2 + $0x48] sm:$0xf]
        %v1417 = vld [vmem:[#allocation2 + $0x4c] sm:$0xf]
        %v1418 = vld [vmem:[#allocation2 + $0x50] sm:$0xf]
        %v1419 = vld [vmem:[#allocation2 + $0x54] sm:$0xf]
        %v1420 = vld [vmem:[#allocation2 + $0x58] sm:$0xf]
        %v1421 = vld [vmem:[#allocation2 + $0x5c] sm:$0xf]
        %v1422 = vld [vmem:[#allocation2 + $0x60] sm:$0xf]
        %v1423 = vld [vmem:[#allocation2 + $0x64] sm:$0xf]
        %v1424 = vld [vmem:[#allocation2 + $0x68] sm:$0xf]
        %v1425 = vld [vmem:[#allocation2 + $0x6c] sm:$0xf]
        %v1426 = vld [vmem:[#allocation2 + $0x70] sm:$0xf]
        %v1427 = vld [vmem:[#allocation2 + $0x74] sm:$0xf]
        %v1428 = vld [vmem:[#allocation2 + $0x78] sm:$0xf]
        %v1429 = vld [vmem:[#allocation2 + $0x7c] sm:$0xf]
        %v1430 = vld [vmem:[%s3] sm:$0xf]
        %v1431 = vld [vmem:[%s3 + $0x4] sm:$0xf]
        %v1432 = vld [vmem:[%s3 + $0x8] sm:$0xf]
        %v1433 = vld [vmem:[%s3 + $0xc] sm:$0xf]
        %v1434 = vld [vmem:[%s3 + $0x10] sm:$0xf]
        %v1435 = vld [vmem:[%s3 + $0x14] sm:$0xf]
        %v1436 = vld [vmem:[%s3 + $0x18] sm:$0xf]
        %v1437 = vld [vmem:[%s3 + $0x1c] sm:$0xf]
        %v1438 = vld [vmem:[%s3 + $0x20] sm:$0xf]
        %v1439 = vld [vmem:[%s3 + $0x24] sm:$0xf]
        %v1440 = vld [vmem:[%s3 + $0x28] sm:$0xf]
        %v1441 = vld [vmem:[%s3 + $0x2c] sm:$0xf]
        %v1442 = vld [vmem:[%s3 + $0x30] sm:$0xf]
        %v1443 = vld [vmem:[%s3 + $0x34] sm:$0xf]
        %v1444 = vld [vmem:[%s3 + $0x38] sm:$0xf]
        %v1445 = vld [vmem:[%s3 + $0x3c] sm:$0xf]
        %v1446 = vld [vmem:[%s4] sm:$0x1]
        %v1448 = vlaneseq
        %v1449 = vshrl.u32 %v1448, 7
        %v1450 = vsub.s32 0, %v1449
        %v1451 = vrot.slane %v1446, %v1450
        %v1485 = vunpack.c.l.b16 %v1398
        %v1486 = vunpack.c.l.b16 %v1399
        %v1487 = vunpack.c.l.b16 %v1400
        %v1488 = vunpack.c.l.b16 %v1401
        %v1489 = vunpack.c.l.b16 %v1402
        %v1490 = vunpack.c.l.b16 %v1403
        %v1491 = vunpack.c.l.b16 %v1404
        %v1492 = vunpack.c.l.b16 %v1405
        %v1493 = vunpack.c.l.b16 %v1406
        %v1494 = vunpack.c.l.b16 %v1407
        %v1495 = vunpack.c.l.b16 %v1408
        %v1496 = vunpack.c.l.b16 %v1409
        %v1497 = vunpack.c.l.b16 %v1410
        %v1498 = vunpack.c.l.b16 %v1411
        %v1499 = vunpack.c.l.b16 %v1412
        %v1500 = vunpack.c.l.b16 %v1413
        %v1501 = vunpack.c.l.b16 %v1414
        %v1502 = vunpack.c.l.b16 %v1415
        %v1503 = vunpack.c.l.b16 %v1416
        %v1504 = vunpack.c.l.b16 %v1417
        %v1505 = vunpack.c.l.b16 %v1418
        %v1506 = vunpack.c.l.b16 %v1419
        %v1507 = vunpack.c.l.b16 %v1420
        %v1508 = vunpack.c.l.b16 %v1421
        %v1509 = vunpack.c.l.b16 %v1422
        %v1510 = vunpack.c.l.b16 %v1423
        %v1511 = vunpack.c.l.b16 %v1424
        %v1512 = vunpack.c.l.b16 %v1425
        %v1513 = vunpack.c.l.b16 %v1426
        %v1514 = vunpack.c.l.b16 %v1427
        %v1515 = vunpack.c.l.b16 %v1428
        %v1516 = vunpack.c.l.b16 %v1429
        %v1517 = vpack.c.b16 %v1486, %v1485
        %v1518 = vpack.c.b16 %v1488, %v1487
        %v1519 = vpack.c.b16 %v1490, %v1489
        %v1520 = vpack.c.b16 %v1492, %v1491
        %v1521 = vpack.c.b16 %v1494, %v1493
        %v1522 = vpack.c.b16 %v1496, %v1495
        %v1523 = vpack.c.b16 %v1498, %v1497
        %v1524 = vpack.c.b16 %v1500, %v1499
        %v1525 = vpack.c.b16 %v1502, %v1501
        %v1526 = vpack.c.b16 %v1504, %v1503
        %v1527 = vpack.c.b16 %v1506, %v1505
        %v1528 = vpack.c.b16 %v1508, %v1507
        %v1529 = vpack.c.b16 %v1510, %v1509
        %v1530 = vpack.c.b16 %v1512, %v1511
        %v1531 = vpack.c.b16 %v1514, %v1513
        %v1532 = vpack.c.b16 %v1516, %v1515
        %v1565 = vunpack.c.l.b16 %v1430
        %v1566 = vunpack.c.l.b16 %v1431
        %v1567 = vunpack.c.l.b16 %v1432
        %v1568 = vunpack.c.l.b16 %v1433
        %v1569 = vunpack.c.l.b16 %v1434
        %v1570 = vunpack.c.l.b16 %v1435
        %v1571 = vunpack.c.l.b16 %v1436
        %v1572 = vunpack.c.l.b16 %v1437
        %v1573 = vunpack.c.l.b16 %v1438
        %v1574 = vunpack.c.l.b16 %v1439
        %v1575 = vunpack.c.l.b16 %v1440
        %v1576 = vunpack.c.l.b16 %v1441
        %v1577 = vunpack.c.l.b16 %v1442
        %v1578 = vunpack.c.l.b16 %v1443
        %v1579 = vunpack.c.l.b16 %v1444
        %v1580 = vunpack.c.l.b16 %v1445
        %v1581 = vpack.c.b16 %v1566, %v1565
        %v1582 = vpack.c.b16 %v1568, %v1567
        %v1583 = vpack.c.b16 %v1570, %v1569
        %v1584 = vpack.c.b16 %v1572, %v1571
        %v1585 = vpack.c.b16 %v1574, %v1573
        %v1586 = vpack.c.b16 %v1576, %v1575
        %v1587 = vpack.c.b16 %v1578, %v1577
        %v1588 = vpack.c.b16 %v1580, %v1579
        %1597 = vmatprep.subr.bf16.mxu0 0
        %1598 = vmatpush1.bf16.msra.mxu0 %v1588
        %1599 = vmatprep.subr.bf16.mxu0 0
        %1600 = vmatpush1.bf16.msra.mxu0 %v1587
        %1601 = vmatprep.subr.bf16.mxu0 0
        %1602 = vmatpush1.bf16.msra.mxu0 %v1586
        %1603 = vmatprep.subr.bf16.mxu0 0
        %1604 = vmatpush1.bf16.msra.mxu0 %v1585
        %1605 = vmatprep.subr.bf16.mxu0 0
        %1606 = vmatpush1.bf16.msra.mxu0 %v1584
        %1607 = vmatprep.subr.bf16.mxu0 0
        %1608 = vmatpush1.bf16.msra.mxu0 %v1583
        %1609 = vmatprep.subr.bf16.mxu0 0
        %1610 = vmatpush1.bf16.msra.mxu0 %v1582
        %1611 = vmatprep.subr.bf16.mxu0 0
        %1612 = vmatpush1.bf16.msra.mxu0 %v1581
        %1613 = vmatprep.subr.bf16.mxu0 0
        %1614 = vmatpush2.bf16.msra.mxu0 0
        %1615 = vmatprep.subr.bf16.mxu0 0
        %1616 = vmatpush2.bf16.msra.mxu0 0
        %1617 = vmatprep.subr.bf16.mxu0 0
        %1618 = vmatpush2.bf16.msra.mxu0 0
        %1619 = vmatprep.subr.bf16.mxu0 0
        %1620 = vmatpush2.bf16.msra.mxu0 0
        %1621 = vmatprep.subr.bf16.mxu0 0
        %1622 = vmatpush2.bf16.msra.mxu0 0
        %1623 = vmatprep.subr.bf16.mxu0 0
        %1624 = vmatpush2.bf16.msra.mxu0 0
        %1625 = vmatprep.subr.bf16.mxu0 0
        %1626 = vmatpush2.bf16.msra.mxu0 0
        %1627 = vmatprep.subr.bf16.mxu0 0
        %1628 = vmatpush2.bf16.msra.mxu0 0
        %1629 = vmatprep.mubr.bf16.mxu0 0
        %1630 = vmatmul.mubr.bf16.gmra.mxu0 %v1517
        %v1631 = vpop.f32.mrf.mxu0
        %v1632 = vadd.f32 %v1451, %v1631
        %v1633 = vpop.f32.mrf.mxu0
        %v1634 = vpop.f32.mrf.mxu0
        %v1635 = vadd.f32 %v1451, %v1634
        %v1636 = vpop.f32.mrf.mxu0
        %1637 = vmatprep.mubr.bf16.mxu0 0
        %1638 = vmatmul.mubr.bf16.gmra.mxu0 %v1518
        %v1639 = vpop.f32.mrf.mxu0
        %v1640 = vadd.f32 %v1451, %v1639
        %v1641 = vpop.f32.mrf.mxu0
        %v1642 = vpop.f32.mrf.mxu0
        %v1643 = vadd.f32 %v1451, %v1642
        %v1644 = vpop.f32.mrf.mxu0
        %1645 = vmatprep.mubr.bf16.mxu0 0
        %1646 = vmatmul.mubr.bf16.gmra.mxu0 %v1519
        %v1647 = vpop.f32.mrf.mxu0
        %v1648 = vadd.f32 %v1451, %v1647
        %v1649 = vpop.f32.mrf.mxu0
        %v1650 = vpop.f32.mrf.mxu0
        %v1651 = vadd.f32 %v1451, %v1650
        %v1652 = vpop.f32.mrf.mxu0
        %1653 = vmatprep.mubr.bf16.mxu0 0
        %1654 = vmatmul.mubr.bf16.gmra.mxu0 %v1520
        %v1655 = vpop.f32.mrf.mxu0
        %v1656 = vadd.f32 %v1451, %v1655
        %v1657 = vpop.f32.mrf.mxu0
        %v1658 = vpop.f32.mrf.mxu0
        %v1659 = vadd.f32 %v1451, %v1658
        %v1660 = vpop.f32.mrf.mxu0
        %1661 = vmatprep.mubr.bf16.mxu0 0
        %1662 = vmatmul.mubr.bf16.gmra.mxu0 %v1521
        %v1663 = vpop.f32.mrf.mxu0
        %v1664 = vadd.f32 %v1451, %v1663
        %v1665 = vpop.f32.mrf.mxu0
        %v1666 = vpop.f32.mrf.mxu0
        %v1667 = vadd.f32 %v1451, %v1666
        %v1668 = vpop.f32.mrf.mxu0
        %1669 = vmatprep.mubr.bf16.mxu0 0
        %1670 = vmatmul.mubr.bf16.gmra.mxu0 %v1522
        %v1671 = vpop.f32.mrf.mxu0
        %v1672 = vadd.f32 %v1451, %v1671
        %v1673 = vpop.f32.mrf.mxu0
        %v1674 = vpop.f32.mrf.mxu0
        %v1675 = vadd.f32 %v1451, %v1674
        %v1676 = vpop.f32.mrf.mxu0
        %1677 = vmatprep.mubr.bf16.mxu0 0
        %1678 = vmatmul.mubr.bf16.gmra.mxu0 %v1523
        %v1679 = vpop.f32.mrf.mxu0
        %v1680 = vadd.f32 %v1451, %v1679
        %v1681 = vpop.f32.mrf.mxu0
        %v1682 = vpop.f32.mrf.mxu0
        %v1683 = vadd.f32 %v1451, %v1682
        %v1684 = vpop.f32.mrf.mxu0
        %1685 = vmatprep.mubr.bf16.mxu0 0
        %1686 = vmatmul.mubr.bf16.gmra.mxu0 %v1524
        %v1687 = vpop.f32.mrf.mxu0
        %v1688 = vadd.f32 %v1451, %v1687
        %v1689 = vpop.f32.mrf.mxu0
        %v1690 = vpop.f32.mrf.mxu0
        %v1691 = vadd.f32 %v1451, %v1690
        %v1692 = vpop.f32.mrf.mxu0
        %1693 = vmatprep.mubr.bf16.mxu0 0
        %1694 = vmatmul.mubr.bf16.gmra.mxu0 %v1525
        %v1695 = vpop.f32.mrf.mxu0
        %v1696 = vadd.f32 %v1451, %v1695
        %v1697 = vpop.f32.mrf.mxu0
        %v1698 = vpop.f32.mrf.mxu0
        %v1699 = vadd.f32 %v1451, %v1698
        %v1700 = vpop.f32.mrf.mxu0
        %1701 = vmatprep.mubr.bf16.mxu0 0
        %1702 = vmatmul.mubr.bf16.gmra.mxu0 %v1526
        %v1703 = vpop.f32.mrf.mxu0
        %v1704 = vadd.f32 %v1451, %v1703
        %v1705 = vpop.f32.mrf.mxu0
        %v1706 = vpop.f32.mrf.mxu0
        %v1707 = vadd.f32 %v1451, %v1706
        %v1708 = vpop.f32.mrf.mxu0
        %1709 = vmatprep.mubr.bf16.mxu0 0
        %1710 = vmatmul.mubr.bf16.gmra.mxu0 %v1527
        %v1711 = vpop.f32.mrf.mxu0
        %v1712 = vadd.f32 %v1451, %v1711
        %v1713 = vpop.f32.mrf.mxu0
        %v1714 = vpop.f32.mrf.mxu0
        %v1715 = vadd.f32 %v1451, %v1714
        %v1716 = vpop.f32.mrf.mxu0
        %1717 = vmatprep.mubr.bf16.mxu0 0
        %1718 = vmatmul.mubr.bf16.gmra.mxu0 %v1528
        %v1719 = vpop.f32.mrf.mxu0
        %v1720 = vadd.f32 %v1451, %v1719
        %v1721 = vpop.f32.mrf.mxu0
        %v1722 = vpop.f32.mrf.mxu0
        %v1723 = vadd.f32 %v1451, %v1722
        %v1724 = vpop.f32.mrf.mxu0
        %1725 = vmatprep.mubr.bf16.mxu0 0
        %1726 = vmatmul.mubr.bf16.gmra.mxu0 %v1529
        %v1727 = vpop.f32.mrf.mxu0
        %v1728 = vadd.f32 %v1451, %v1727
        %v1729 = vpop.f32.mrf.mxu0
        %v1730 = vpop.f32.mrf.mxu0
        %v1731 = vadd.f32 %v1451, %v1730
        %v1732 = vpop.f32.mrf.mxu0
        %1733 = vmatprep.mubr.bf16.mxu0 0
        %1734 = vmatmul.mubr.bf16.gmra.mxu0 %v1530
        %v1735 = vpop.f32.mrf.mxu0
        %v1736 = vadd.f32 %v1451, %v1735
        %v1737 = vpop.f32.mrf.mxu0
        %v1738 = vpop.f32.mrf.mxu0
        %v1739 = vadd.f32 %v1451, %v1738
        %v1740 = vpop.f32.mrf.mxu0
        %1741 = vmatprep.mubr.bf16.mxu0 0
        %1742 = vmatmul.mubr.bf16.gmra.mxu0 %v1531
        %v1743 = vpop.f32.mrf.mxu0
        %v1744 = vadd.f32 %v1451, %v1743
        %v1745 = vpop.f32.mrf.mxu0
        %v1746 = vpop.f32.mrf.mxu0
        %v1747 = vadd.f32 %v1451, %v1746
        %v1748 = vpop.f32.mrf.mxu0
        %1749 = vmatprep.mubr.bf16.mxu0 0
        %1750 = vmatmul.mubr.bf16.gmra.mxu0 %v1532
        %v1751 = vpop.f32.mrf.mxu0
        %v1752 = vadd.f32 %v1451, %v1751
        %v1753 = vpop.f32.mrf.mxu0
        %v1754 = vpop.f32.mrf.mxu0
        %v1755 = vadd.f32 %v1451, %v1754
        %v1756 = vpop.f32.mrf.mxu0
        %1757 = vdwg.mxu0
        %v1758 = vmax.f32 %v1632, 0.0
        %v1759 = vmax.f32 %v1635, 0.0
        %v1760 = vmax.f32 %v1640, 0.0
        %v1761 = vmax.f32 %v1643, 0.0
        %v1762 = vmax.f32 %v1648, 0.0
        %v1763 = vmax.f32 %v1651, 0.0
        %v1764 = vmax.f32 %v1656, 0.0
        %v1765 = vmax.f32 %v1659, 0.0
        %v1766 = vmax.f32 %v1664, 0.0
        %v1767 = vmax.f32 %v1667, 0.0
        %v1768 = vmax.f32 %v1672, 0.0
        %v1769 = vmax.f32 %v1675, 0.0
        %v1770 = vmax.f32 %v1680, 0.0
        %v1771 = vmax.f32 %v1683, 0.0
        %v1772 = vmax.f32 %v1688, 0.0
        %v1773 = vmax.f32 %v1691, 0.0
        %v1774 = vmax.f32 %v1696, 0.0
        %v1775 = vmax.f32 %v1699, 0.0
        %v1776 = vmax.f32 %v1704, 0.0
        %v1777 = vmax.f32 %v1707, 0.0
        %v1778 = vmax.f32 %v1712, 0.0
        %v1779 = vmax.f32 %v1715, 0.0
        %v1780 = vmax.f32 %v1720, 0.0
        %v1781 = vmax.f32 %v1723, 0.0
        %v1782 = vmax.f32 %v1728, 0.0
        %v1783 = vmax.f32 %v1731, 0.0
        %v1784 = vmax.f32 %v1736, 0.0
        %v1785 = vmax.f32 %v1739, 0.0
        %v1786 = vmax.f32 %v1744, 0.0
        %v1787 = vmax.f32 %v1747, 0.0
        %v1788 = vmax.f32 %v1752, 0.0
        %v1789 = vmax.f32 %v1755, 0.0
        %v1790 = vmin.f32 %v1758, 6.0
        %v1791 = vmin.f32 %v1759, 6.0
        %v1792 = vmin.f32 %v1760, 6.0
        %v1793 = vmin.f32 %v1761, 6.0
        %v1794 = vmin.f32 %v1762, 6.0
        %v1795 = vmin.f32 %v1763, 6.0
        %v1796 = vmin.f32 %v1764, 6.0
        %v1797 = vmin.f32 %v1765, 6.0
        %v1798 = vmin.f32 %v1766, 6.0
        %v1799 = vmin.f32 %v1767, 6.0
        %v1800 = vmin.f32 %v1768, 6.0
        %v1801 = vmin.f32 %v1769, 6.0
        %v1802 = vmin.f32 %v1770, 6.0
        %v1803 = vmin.f32 %v1771, 6.0
        %v1804 = vmin.f32 %v1772, 6.0
        %v1805 = vmin.f32 %v1773, 6.0
        %v1806 = vmin.f32 %v1774, 6.0
        %v1807 = vmin.f32 %v1775, 6.0
        %v1808 = vmin.f32 %v1776, 6.0
        %v1809 = vmin.f32 %v1777, 6.0
        %v1810 = vmin.f32 %v1778, 6.0
        %v1811 = vmin.f32 %v1779, 6.0
        %v1812 = vmin.f32 %v1780, 6.0
        %v1813 = vmin.f32 %v1781, 6.0
        %v1814 = vmin.f32 %v1782, 6.0
        %v1815 = vmin.f32 %v1783, 6.0
        %v1816 = vmin.f32 %v1784, 6.0
        %v1817 = vmin.f32 %v1785, 6.0
        %v1818 = vmin.f32 %v1786, 6.0
        %v1819 = vmin.f32 %v1787, 6.0
        %v1820 = vmin.f32 %v1788, 6.0
        %v1821 = vmin.f32 %v1789, 6.0
        %1822 = vst [vmem:[%s231] sm:$0xff] %v1790
        %1823 = vst [vmem:[%s231 + $0x8] sm:$0xff] %v1791
        %1824 = vst [vmem:[%s231 + $0x10] sm:$0xff] %v1792
        %1825 = vst [vmem:[%s231 + $0x18] sm:$0xff] %v1793
        %1826 = vst [vmem:[%s231 + $0x20] sm:$0xff] %v1794
        %1827 = vst [vmem:[%s231 + $0x28] sm:$0xff] %v1795
        %1828 = vst [vmem:[%s231 + $0x30] sm:$0xff] %v1796
        %1829 = vst [vmem:[%s231 + $0x38] sm:$0xff] %v1797
        %1830 = vst [vmem:[%s231 + $0x40] sm:$0xff] %v1798
        %1831 = vst [vmem:[%s231 + $0x48] sm:$0xff] %v1799
        %1832 = vst [vmem:[%s231 + $0x50] sm:$0xff] %v1800
        %1833 = vst [vmem:[%s231 + $0x58] sm:$0xff] %v1801
        %1834 = vst [vmem:[%s231 + $0x60] sm:$0xff] %v1802
        %1835 = vst [vmem:[%s231 + $0x68] sm:$0xff] %v1803
        %1836 = vst [vmem:[%s231 + $0x70] sm:$0xff] %v1804
        %1837 = vst [vmem:[%s231 + $0x78] sm:$0xff] %v1805
        %1838 = vst [vmem:[%s231 + $0x80] sm:$0xff] %v1806
        %1839 = vst [vmem:[%s231 + $0x88] sm:$0xff] %v1807
        %1840 = vst [vmem:[%s231 + $0x90] sm:$0xff] %v1808
        %1841 = vst [vmem:[%s231 + $0x98] sm:$0xff] %v1809
        %1842 = vst [vmem:[%s231 + $0xa0] sm:$0xff] %v1810
        %1843 = vst [vmem:[%s231 + $0xa8] sm:$0xff] %v1811
        %1844 = vst [vmem:[%s231 + $0xb0] sm:$0xff] %v1812
        %1845 = vst [vmem:[%s231 + $0xb8] sm:$0xff] %v1813
        %1846 = vst [vmem:[%s231 + $0xc0] sm:$0xff] %v1814
        %1847 = vst [vmem:[%s231 + $0xc8] sm:$0xff] %v1815
        %1848 = vst [vmem:[%s231 + $0xd0] sm:$0xff] %v1816
        %1849 = vst [vmem:[%s231 + $0xd8] sm:$0xff] %v1817
        %1850 = vst [vmem:[%s231 + $0xe0] sm:$0xff] %v1818
        %1851 = vst [vmem:[%s231 + $0xe8] sm:$0xff] %v1819
        %1852 = vst [vmem:[%s231 + $0xf0] sm:$0xff] %v1820
        %1853 = vst [vmem:[%s231 + $0xf8] sm:$0xff] %v1821
        %s1854 = sand.u32 %s151, 1
        %s1855 = scalar_lea.sflag [#allocation4], %s1854
        %s1856 = sand.u32 %s151, 1
        %s1857 = smul.addr %s1856, 256
        %s1858 = scalar_lea.vmem [#allocation3], %s1857
        // Predicated region
        $region48: #{tpu_custom_call.1} parent=39 // pred_check
          %p1859 = pneg %p161
        $region49: #{tpu_custom_call.1} parent=39 // pred_check_branch
          %1861 = sbr.rel (%p1859) target = $region51
        $region50: #{tpu_custom_call.1} parent=39 // pred_region
          %s1862 = smul.u32 16, %s24
          %s1864 = ssub.s32 4096, 4096
          %1865 = vsyncadd %s1855, %s1864
          %s1866 = smul.addr %s1862, 2
          %s1867 = smul.addr %s23, 32
          %s1868 = sadd.s32 %s1866, %s1867
          %s1869 = smul.addr %s1868, 128
          %s1870 = scalar_lea.hbm %s5, %s1869
          %s1871 = sshll.u32 %s1858, 4
          %s1872 = int_to_ptr.vmem [resolvable:$true] %s1871
          %1877 = dma.vmem_to_hbm [thread:$0]  %s1872, 4096, %s1870, %s1855, 128, 128, 8
        $region51: #{tpu_custom_call.1} parent=39 // pred_fallthru
          _
      $region40: #{tpu_custom_call.1} parent=5 // pred_fallthru
        _
      %p1878 = scmp.le.s32.totalorder 2, %s14
      // Predicated region
      $region52: #{tpu_custom_call.1} parent=5 // pred_check
        %p1879 = pneg %p1878
      $region53: #{tpu_custom_call.1} parent=5 // pred_check_branch
        %1881 = sbr.rel (%p1879) target = $region55
      $region54: #{tpu_custom_call.1} parent=5 // pred_region
        %s1882 = ssub.s32 %s14, 2
        // Predicated region
        $region56: #{tpu_custom_call.1} parent=54 // pred_check
          %p1883 = pneg %p167
        $region57: #{tpu_custom_call.1} parent=54 // pred_check_branch
          %1885 = sbr.rel (%p1883) target = $region59
        $region58: #{tpu_custom_call.1} parent=54 // pred_region
          %s1886 = sand.u32 %s152, 1
          %s1887 = scalar_lea.sflag [#allocation4], %s1886
          %s1888 = sand.u32 %s152, 1
          %s1889 = smul.addr %s1888, 256
          %s1890 = scalar_lea.vmem [#allocation3], %s1889
          %1891 = dma.done %s1887, 4096
        $region59: #{tpu_custom_call.1} parent=54 // pred_fallthru
          _
      $region55: #{tpu_custom_call.1} parent=5 // pred_fallthru
        _
    $region6: #{tpu_custom_call.1} parent=1 // loop_footer
      %s18 = sadd.s32 1, %s14
    $region7: #{tpu_custom_call.1} parent=1 // loop_footer_branch
      %13 = sbr.rel target = $region3
    $region8: #{tpu_custom_call.1} parent=1 // loop_exit
      _
    %1892 = vsyncpa [#allocation4], 1
    %s1893 = scalar_lea.sflag [#allocation4], 1
    %1894 = vsyncpa %s1893, 1

</llo_original>
